<compile_context>
chip_gen: v7x
topology: tpu7x:2x2x1
jax: 0.10.0
libtpu: 0.0.40
codegen_flags: <defaults>
</compile_context>

<pallas_src>
import functools
import math

import jax
import jax.numpy as jnp
from jax import lax
from jax.experimental import pallas as pl
from jax.experimental.pallas import tpu as pltpu


# ---------------------------------------------------------------------------
# Math helpers
# ---------------------------------------------------------------------------

def _gelu_exact(x):
    # PyTorch F.gelu default is the exact erf-based GELU.
    return 0.5 * x * (1.0 + lax.erf(x * (1.0 / math.sqrt(2.0))))


def _layernorm(x, g, b, eps=1e-5):
    mu = jnp.mean(x, axis=-1, keepdims=True)
    var = jnp.mean((x - mu) ** 2, axis=-1, keepdims=True)
    return (x - mu) * lax.rsqrt(var + eps) * g + b


def _round_up(x, m):
    return -(-x // m) * m


# ---------------------------------------------------------------------------
# Hardware-aware sizing
# ---------------------------------------------------------------------------

def _tpu_vmem_and_cores():
    """(per-core VMEM bytes, #TensorCores sharing the 'parallel' grid axis)."""
    try:
        info = pltpu.get_tpu_info()
        vmem = int(getattr(info, "vmem_capacity_bytes", 0)) or (128 << 20)
    except Exception:
        vmem = 128 << 20
    # Heuristic: ~64 MiB/core => v7x-class chip with 2 TCs; 128 MiB => single-TC v5e/v6e.
    cores = 2 if vmem <= (80 << 20) else 1
    return vmem, cores


def _block_vmem_bytes(tile_n, B, D1, tile_k, D2):
    """Estimated VMEM footprint of one grid step (sublane-padding aware)."""
    b32 = _round_up(B, 8)    # f32 sublane tile
    b16 = _round_up(B, 16)   # bf16 sublane tile
    # Double-buffered pipeline blocks (inputs + output), per buffer:
    x_b = tile_n * b32 * D1 * 4
    u_b = tile_n * tile_k * D2 * 2          # bf16 U
    bias_b = tile_n * b32 * D2 * 4
    out_b = tile_n * b32 * D2 * 4
    ln_b = 8 * (D1 + D2) * 4                # (2,D) padded to (8,D)
    io = 2 * (x_b + u_b + bias_b + out_b + ln_b)
    # Accumulator scratch (single buffer):
    acc = tile_n * b32 * D2 * 4
    # Temporaries live around the dot: x f32, xn f32, xn bf16, act f32, y f32.
    live = tile_n * (2 * b32 * D1 * 4 + b16 * D1 * 2 + 2 * b32 * D2 * 4)
    return io + acc + live


def _pick_tiles(N, B, D1, D2, *, vmem_cap=None, n_cores=None):
    if vmem_cap is None or n_cores is None:
        cap, cores = _tpu_vmem_and_cores()
        vmem_cap = cap if vmem_cap is None else vmem_cap
        n_cores = cores if n_cores is None else n_cores
    budget = int(vmem_cap * 0.55)

    # --- K (D1) tiling of U: only needed when even a tile_n == 1 block is too big ---
    tile_k = D1
    if _block_vmem_bytes(1, B, D1, D1, D2) > budget:
        cands = [d for d in range(D1, 0, -1)
                 if D1 % d == 0 and (d % 128 == 0 or d % 8 == 0)]
        fitting = [d for d in cands if _block_vmem_bytes(1, B, D1, d, D2) <= budget]
        if fitting:
            lane_aligned = [d for d in fitting if d % 128 == 0]
            tile_k = (lane_aligned or fitting)[0]     # largest fitting (descending lists)
        elif cands:
            tile_k = cands[-1]                        # smallest splittable; best effort

    # --- tile_n: biggest ensemble tile that fits the budget ---
    per_n = max(1, _block_vmem_bytes(1, B, D1, tile_k, D2))
    tile_n = max(1, min(N, budget // per_n, 512))

    # --- multi-TC chips: >= 2 grid steps per TensorCore so each core double-buffers ---
    if n_cores >= 2 and (D1 // tile_k) == 1 and N >= 2 * n_cores:
        tile_n = min(tile_n, -(-N // (2 * n_cores)))

    # --- prefer a tile_n that divides N (avoid per-call padding of x) ---
    if N % tile_n != 0:
        div = max(d for d in range(1, tile_n + 1) if N % d == 0)
        if div * 2 >= tile_n:
            tile_n = div

    return tile_n, tile_k


# ---------------------------------------------------------------------------
# Kernel
# ---------------------------------------------------------------------------

def _be_layer_kernel(x_ref, u_ref, bias_ref, ln1_ref, ln2_ref, o_ref, acc_ref,
                     *, k_steps, tile_k):
    k = pl.program_id(1)

    @pl.when(k == 0)
    def _():
        acc_ref[...] = jnp.zeros_like(acc_ref)

    # LayerNorm-1 statistics over the full input_size row (x block carries full D1).
    x = x_ref[...].astype(jnp.float32)                         # (tn, B, D1)
    mu = jnp.mean(x, axis=-1, keepdims=True)
    var = jnp.mean((x - mu) ** 2, axis=-1, keepdims=True)
    inv = lax.rsqrt(var + 1e-5)

    if k_steps == 1:
        xc = x
        g1 = ln1_ref[0]
        b1 = ln1_ref[1]
    else:
        off = k * tile_k
        if tile_k % 128 == 0:
            off = pl.multiple_of(off, 128)
        xc = x_ref[:, :, pl.ds(off, tile_k)].astype(jnp.float32)
        g1 = ln1_ref[0, pl.ds(off, tile_k)]
        b1 = ln1_ref[1, pl.ds(off, tile_k)]
    xn = (xc - mu) * inv * g1.astype(jnp.float32) + b1.astype(jnp.float32)

    # Per-ensemble matmul on the MXU: bf16 operands, f32 accumulation.
    acc_ref[...] += lax.dot_general(
        xn.astype(jnp.bfloat16), u_ref[...],                   # u_ref already bf16
        dimension_numbers=(((2,), (1,)), ((0,), (0,))),
        preferred_element_type=jnp.float32)                     # (tn, B, D2)

    @pl.when(k == k_steps - 1)
    def _():
        act = acc_ref[...] + bias_ref[...].astype(jnp.float32)
        y = _layernorm(act, ln2_ref[0].astype(jnp.float32), ln2_ref[1].astype(jnp.float32))
        o_ref[...] = _gelu_exact(y).astype(o_ref.dtype)


# ---------------------------------------------------------------------------
# Wrapper
# ---------------------------------------------------------------------------

@functools.partial(jax.jit, static_argnames=("tile_n", "tile_k"))
def be_layer_forward(x, u_bf16, bias, ln1, ln2, *, tile_n, tile_k):
    """x: (N, B, D1) f32.  u_bf16/bias: prepared (padded) params.  Returns (N, B, D2) f32."""
    N, B, D1 = x.shape
    Np, _, D2 = bias.shape
    assert u_bf16.shape == (Np, D1, D2)
    assert Np >= N and Np % tile_n == 0 and D1 % tile_k == 0

    if Np != N:
        # Cheap per-call padding of x only (U/bias were padded once at prepare time).
        x = jnp.pad(x, ((0, Np - N), (0, 0), (0, 0)))

    n_steps = Np // tile_n
    k_steps = D1 // tile_k

    vmem_cap, _ = _tpu_vmem_and_cores()
    vmem_limit = int(min(int(0.9 * vmem_cap),
                         max(32 << 20,
                             _block_vmem_bytes(tile_n, B, D1, tile_k, D2) + (8 << 20))))

    kernel = functools.partial(_be_layer_kernel, k_steps=k_steps, tile_k=tile_k)

    out = pl.pallas_call(
        kernel,
        out_shape=jax.ShapeDtypeStruct((Np, B, D2), x.dtype),
        grid=(n_steps, k_steps),
        in_specs=[
            pl.BlockSpec((tile_n, B, D1), lambda i, k: (i, 0, 0)),      # x (same block over k)
            pl.BlockSpec((tile_n, tile_k, D2), lambda i, k: (i, k, 0)), # U (bf16, streamed)
            pl.BlockSpec((tile_n, B, D2), lambda i, k: (i, 0, 0)),      # bias
            pl.BlockSpec((2, D1), lambda i, k: (0, 0)),                 # LN1 gamma/beta
            pl.BlockSpec((2, D2), lambda i, k: (0, 0)),                 # LN2 gamma/beta
        ],
        out_specs=pl.BlockSpec((tile_n, B, D2), lambda i, k: (i, 0, 0)),
        scratch_shapes=[pltpu.VMEM((tile_n, B, D2), jnp.float32)],
        compiler_params=pltpu.CompilerParams(
            dimension_semantics=("parallel", "arbitrary"),
            vmem_limit_bytes=vmem_limit),
    )(x, u_bf16, bias, ln1, ln2)

    return out[:N]


# ---------------------------------------------------------------------------
# Parameters
# ---------------------------------------------------------------------------

def init_params(key, batch_size, branch, input_size, hidden_size):
    k1, k2 = jax.random.split(key, 2)
    # torch.normal(0, 0.01) for U and bias; LayerNorm defaults: weight=1, bias=0.
    return {
        "U": 0.01 * jax.random.normal(k1, (batch_size, input_size, hidden_size), jnp.float32),
        "bias": 0.01 * jax.random.normal(k2, (batch_size, branch, hidden_size), jnp.float32),
        "g1": jnp.ones((input_size,), jnp.float32),
        "b1": jnp.zeros((input_size,), jnp.float32),
        "g2": jnp.ones((hidden_size,), jnp.float32),
        "b2": jnp.zeros((hidden_size,), jnp.float32),
    }


def prepare_params(params, *, tile_n=None, tile_k=None, vmem_cap=None, n_cores=None):
    """One-time parameter preprocessing (do NOT call per forward step):
       - cast U to bf16 (halves the dominant HBM stream),
       - merge LayerNorm gamma/beta into (2, D) arrays,
       - pad the ensemble axis of U/bias to a tile_n multiple.
    Returns (prepared_params, tile_n, tile_k)."""
    U, bias = params["U"], params["bias"]
    N, D1, D2 = U.shape
    B = bias.shape[1]

    auto_tn, auto_tk = _pick_tiles(N, B, D1, D2, vmem_cap=vmem_cap, n_cores=n_cores)
    tile_n = auto_tn if tile_n is None else int(tile_n)
    tile_k = auto_tk if tile_k is None else int(tile_k)
    assert D1 % tile_k == 0, "tile_k must divide input_size"

    Np = _round_up(N, tile_n)
    u_bf16 = U.astype(jnp.bfloat16)
    bias_f32 = bias.astype(jnp.float32)
    if Np != N:
        u_bf16 = jnp.pad(u_bf16, ((0, Np - N), (0, 0), (0, 0)))
        bias_f32 = jnp.pad(bias_f32, ((0, Np - N), (0, 0), (0, 0)))

    prepped = {
        "U": u_bf16,
        "bias": bias_f32,
        "ln1": jnp.stack([params["g1"], params["b1"]]).astype(jnp.float32),
        "ln2": jnp.stack([params["g2"], params["b2"]]).astype(jnp.float32),
    }
    return prepped, tile_n, tile_k


# ---------------------------------------------------------------------------
# Reference (pure JAX, mirrors the PyTorch forward)
# ---------------------------------------------------------------------------

def _reference(x, p, *, weights_dtype=jnp.float32):
    xn = _layernorm(x.astype(jnp.float32), p["g1"], p["b1"])
    act = lax.dot_general(
        xn.astype(weights_dtype), p["U"].astype(weights_dtype),
        dimension_numbers=(((2,), (1,)), ((0,), (0,))),
        preferred_element_type=jnp.float32)
    act = act + p["bias"]
    return _gelu_exact(_layernorm(act, p["g2"], p["b2"]))


# ---------------------------------------------------------------------------
# Demo / correctness check
# ---------------------------------------------------------------------------

if __name__ == "__main__":
    key = jax.random.PRNGKey(0)
    k1, k2, k3, k4 = jax.random.split(key, 4)

    # ---- Test 1: lane-dense shapes, single K step ----
    N, B, D1, D2 = 16, 4, 128, 128
    x = jax.random.normal(k1, (N, B, D1), jnp.float32)
    params = init_params(k2, N, B, D1, D2)
    prepped, tn, tk = prepare_params(params)
    out = be_layer_forward(x, prepped["U"], prepped["bias"], prepped["ln1"], prepped["ln2"],
                           tile_n=tn, tile_k=tk)
    out = jax.block_until_ready(out)
    assert out.shape == (N, B, D2)
    # vs true f32 PyTorch semantics: U is stored bf16 (~0.2% weight rounding), so the
    # documented tolerance is 3e-2 after LayerNorm2 renormalization.
    ref32 = _reference(x, params, weights_dtype=jnp.float32)
    assert bool(jnp.allclose(out, ref32, atol=3e-2, rtol=3e-2)), \
        float(jnp.max(jnp.abs(out - ref32)))
    # vs matched-precision (bf16-weight) reference: tight tolerance.
    refbf = _reference(x, params, weights_dtype=jnp.bfloat16)
    assert bool(jnp.allclose(out, refbf, atol=2e-3, rtol=2e-3)), \
        float(jnp.max(jnp.abs(out - refbf)))

    # ---- Test 2: ragged N + K-tiled accumulator path (tile_k < D1) ----
    N2, B2, D12, D22 = 6, 4, 256, 128
    x2 = jax.random.normal(k3, (N2, B2, D12), jnp.float32)
    params2 = init_params(k4, N2, B2, D12, D22)
    prepped2, tn2, tk2 = prepare_params(params2, tile_n=4, tile_k=128)  # forces 2 K steps
    out2 = be_layer_forward(x2, prepped2["U"], prepped2["bias"], prepped2["ln1"],
                            prepped2["ln2"], tile_n=tn2, tile_k=tk2)
    out2 = jax.block_until_ready(out2)
    assert out2.shape == (N2, B2, D22)
    ref2 = _reference(x2, params2, weights_dtype=jnp.float32)
    assert bool(jnp.allclose(out2, ref2, atol=3e-2, rtol=3e-2)), \
        float(jnp.max(jnp.abs(out2 - ref2)))

    print("KERNEL_OK")
</pallas_src>

<mosaic_0001>
module attributes {stable_mosaic.version = 11 : i64} {
  func.func @_be_layer_kernel(%arg0: i32, %arg1: i32, %arg2: memref<16x4x128xf32, #tpu.memory_space<vmem>>, %arg3: memref<16x128x128xbf16, #tpu.memory_space<vmem>>, %arg4: memref<16x4x128xf32, #tpu.memory_space<vmem>>, %arg5: memref<2x128xf32, #tpu.memory_space<vmem>>, %arg6: memref<2x128xf32, #tpu.memory_space<vmem>>, %arg7: memref<16x4x128xf32, #tpu.memory_space<vmem>>, %arg8: memref<16x4x128xf32, #tpu.memory_space<vmem>>) attributes {dimension_semantics = [#tpu.dimension_semantics<parallel>, #tpu.dimension_semantics<arbitrary>], iteration_bounds = array<i64: 1, 1>, scalar_prefetch = 0 : i64, scratch_operands = 1 : i64, tpu.core_type = #tpu.core_type<tc>, window_params = [{transform_indices = @transform_0, window_bounds = array<i64: 16, 4, 128>}, {transform_indices = @transform_1, window_bounds = array<i64: 16, 128, 128>}, {transform_indices = @transform_2, window_bounds = array<i64: 16, 4, 128>}, {pipeline_mode = #tpu.pipeline_mode<synchronous>, transform_indices = @transform_3, window_bounds = array<i64: 2, 128>}, {pipeline_mode = #tpu.pipeline_mode<synchronous>, transform_indices = @transform_4, window_bounds = array<i64: 2, 128>}, {transform_indices = @transform_5, window_bounds = array<i64: 16, 4, 128>}]} {
    %c0_i32 = arith.constant 0 : i32
    %0 = arith.cmpi eq, %arg1, %c0_i32 : i32
    %1 = arith.extui %0 : i1 to i32
    %c0_i32_0 = arith.constant 0 : i32
    %2 = arith.cmpi ne, %1, %c0_i32_0 : i32
    scf.if %2 {
      %cst_22 = arith.constant 0.000000e+00 : f32
      %41 = vector.broadcast %cst_22 : f32 to vector<16x4x128xf32>
      %c0_23 = arith.constant 0 : index
      %c0_24 = arith.constant 0 : index
      %c0_25 = arith.constant 0 : index
      %42 = vector.load %arg8[%c0_23, %c0_24, %c0_25] : memref<16x4x128xf32, #tpu.memory_space<vmem>>, vector<16x4x128xf32>
      tpu.vector_store %arg8[%c0_23, %c0_24, %c0_25], %41 {strides = array<i32>} : memref<16x4x128xf32, #tpu.memory_space<vmem>>, vector<16x4x128xf32>,
    } else {
    }
    %c0 = arith.constant 0 : index
    %c0_1 = arith.constant 0 : index
    %c0_2 = arith.constant 0 : index
    %3 = vector.load %arg2[%c0, %c0_1, %c0_2] : memref<16x4x128xf32, #tpu.memory_space<vmem>>, vector<16x4x128xf32>
    %cst = arith.constant dense<0.000000e+00> : vector<16x4xf32>
    %4 = vector.multi_reduction <add>, %3, %cst [2] : vector<16x4x128xf32> to vector<16x4xf32>
    %5 = vector.shape_cast %4 : vector<16x4xf32> to vector<16x4x1xf32>
    %cst_3 = arith.constant 1.280000e+02 : f32
    %6 = vector.broadcast %cst_3 : f32 to vector<16x4x1xf32>
    %7 = arith.divf %5, %6 : vector<16x4x1xf32>
    %8 = vector.broadcast %7 : vector<16x4x1xf32> to vector<16x4x128xf32>
    %9 = arith.subf %3, %8 : vector<16x4x128xf32>
    %10 = arith.mulf %9, %9 : vector<16x4x128xf32>
    %cst_4 = arith.constant dense<0.000000e+00> : vector<16x4xf32>
    %11 = vector.multi_reduction <add>, %10, %cst_4 [2] : vector<16x4x128xf32> to vector<16x4xf32>
    %12 = vector.shape_cast %11 : vector<16x4xf32> to vector<16x4x1xf32>
    %cst_5 = arith.constant 1.280000e+02 : f32
    %13 = vector.broadcast %cst_5 : f32 to vector<16x4x1xf32>
    %14 = arith.divf %12, %13 : vector<16x4x1xf32>
    %cst_6 = arith.constant 9.99999974E-6 : f32
    %15 = vector.broadcast %cst_6 : f32 to vector<16x4x1xf32>
    %16 = arith.addf %14, %15 : vector<16x4x1xf32>
    %17 = math.rsqrt %16 : vector<16x4x1xf32>
    %c0_7 = arith.constant 0 : index
    %c0_8 = arith.constant 0 : index
    %18 = vector.load %arg5[%c0_7, %c0_8] : memref<2x128xf32, #tpu.memory_space<vmem>>, vector<1x128xf32>
    %19 = vector.shape_cast %18 : vector<1x128xf32> to vector<128xf32>
    %c1 = arith.constant 1 : index
    %c0_9 = arith.constant 0 : index
    %20 = vector.load %arg5[%c1, %c0_9] : memref<2x128xf32, #tpu.memory_space<vmem>>, vector<1x128xf32>
    %21 = vector.shape_cast %20 : vector<1x128xf32> to vector<128xf32>
    %22 = vector.broadcast %7 : vector<16x4x1xf32> to vector<16x4x128xf32>
    %23 = arith.subf %3, %22 : vector<16x4x128xf32>
    %24 = vector.broadcast %17 : vector<16x4x1xf32> to vector<16x4x128xf32>
    %25 = arith.mulf %23, %24 : vector<16x4x128xf32>
    %26 = vector.shape_cast %19 : vector<128xf32> to vector<1x1x128xf32>
    %27 = vector.broadcast %26 : vector<1x1x128xf32> to vector<16x4x128xf32>
    %28 = arith.mulf %25, %27 : vector<16x4x128xf32>
    %29 = vector.shape_cast %21 : vector<128xf32> to vector<1x1x128xf32>
    %30 = vector.broadcast %29 : vector<1x1x128xf32> to vector<16x4x128xf32>
    %31 = arith.addf %28, %30 : vector<16x4x128xf32>
    %c0_10 = arith.constant 0 : index
    %c0_11 = arith.constant 0 : index
    %c0_12 = arith.constant 0 : index
    %32 = vector.load %arg8[%c0_10, %c0_11, %c0_12] : memref<16x4x128xf32, #tpu.memory_space<vmem>>, vector<16x4x128xf32>
    %33 = arith.truncf %31 : vector<16x4x128xf32> to vector<16x4x128xbf16>
    %c0_13 = arith.constant 0 : index
    %c0_14 = arith.constant 0 : index
    %c0_15 = arith.constant 0 : index
    %34 = vector.load %arg3[%c0_13, %c0_14, %c0_15] : memref<16x128x128xbf16, #tpu.memory_space<vmem>>, vector<16x128x128xbf16>
    %cst_16 = arith.constant dense<0.000000e+00> : vector<16x4x128xf32>
    %35 = tpu.matmul %33, %34, %cst_16 {dimension_numbers = #tpu.dot_dimension_numbers<[2], [1], [1], [2], [0, 0, 0, 1, 1, 2], [0], [0]>} : vector<16x4x128xbf16>, vector<16x128x128xbf16>, vector<16x4x128xf32> -> vector<16x4x128xf32>
    %36 = arith.addf %32, %35 : vector<16x4x128xf32>
    %c0_17 = arith.constant 0 : index
    %c0_18 = arith.constant 0 : index
    %c0_19 = arith.constant 0 : index
    %37 = vector.load %arg8[%c0_17, %c0_18, %c0_19] : memref<16x4x128xf32, #tpu.memory_space<vmem>>, vector<16x4x128xf32>
    tpu.vector_store %arg8[%c0_17, %c0_18, %c0_19], %36 {strides = array<i32>} : memref<16x4x128xf32, #tpu.memory_space<vmem>>, vector<16x4x128xf32>,
    %c0_i32_20 = arith.constant 0 : i32
    %38 = arith.cmpi eq, %arg1, %c0_i32_20 : i32
    %39 = arith.extui %38 : i1 to i32
    %c0_i32_21 = arith.constant 0 : i32
    %40 = arith.cmpi ne, %39, %c0_i32_21 : i32
    scf.if %40 {
      %c0_22 = arith.constant 0 : index
      %c0_23 = arith.constant 0 : index
      %c0_24 = arith.constant 0 : index
      %41 = vector.load %arg8[%c0_22, %c0_23, %c0_24] : memref<16x4x128xf32, #tpu.memory_space<vmem>>, vector<16x4x128xf32>
      %c0_25 = arith.constant 0 : index
      %c0_26 = arith.constant 0 : index
      %c0_27 = arith.constant 0 : index
      %42 = vector.load %arg4[%c0_25, %c0_26, %c0_27] : memref<16x4x128xf32, #tpu.memory_space<vmem>>, vector<16x4x128xf32>
      %43 = arith.addf %41, %42 : vector<16x4x128xf32>
      %c0_28 = arith.constant 0 : index
      %c0_29 = arith.constant 0 : index
      %44 = vector.load %arg6[%c0_28, %c0_29] : memref<2x128xf32, #tpu.memory_space<vmem>>, vector<1x128xf32>
      %45 = vector.shape_cast %44 : vector<1x128xf32> to vector<128xf32>
      %c1_30 = arith.constant 1 : index
      %c0_31 = arith.constant 0 : index
      %46 = vector.load %arg6[%c1_30, %c0_31] : memref<2x128xf32, #tpu.memory_space<vmem>>, vector<1x128xf32>
      %47 = vector.shape_cast %46 : vector<1x128xf32> to vector<128xf32>
      %cst_32 = arith.constant dense<0.000000e+00> : vector<16x4xf32>
      %48 = vector.multi_reduction <add>, %43, %cst_32 [2] : vector<16x4x128xf32> to vector<16x4xf32>
      %49 = vector.shape_cast %48 : vector<16x4xf32> to vector<16x4x1xf32>
      %cst_33 = arith.constant 1.280000e+02 : f32
      %50 = vector.broadcast %cst_33 : f32 to vector<16x4x1xf32>
      %51 = arith.divf %49, %50 : vector<16x4x1xf32>
      %52 = vector.broadcast %51 : vector<16x4x1xf32> to vector<16x4x128xf32>
      %53 = arith.subf %43, %52 : vector<16x4x128xf32>
      %54 = arith.mulf %53, %53 : vector<16x4x128xf32>
      %cst_34 = arith.constant dense<0.000000e+00> : vector<16x4xf32>
      %55 = vector.multi_reduction <add>, %54, %cst_34 [2] : vector<16x4x128xf32> to vector<16x4xf32>
      %56 = vector.shape_cast %55 : vector<16x4xf32> to vector<16x4x1xf32>
      %cst_35 = arith.constant 1.280000e+02 : f32
      %57 = vector.broadcast %cst_35 : f32 to vector<16x4x1xf32>
      %58 = arith.divf %56, %57 : vector<16x4x1xf32>
      %59 = vector.broadcast %51 : vector<16x4x1xf32> to vector<16x4x128xf32>
      %60 = arith.subf %43, %59 : vector<16x4x128xf32>
      %cst_36 = arith.constant 9.99999974E-6 : f32
      %61 = vector.broadcast %cst_36 : f32 to vector<16x4x1xf32>
      %62 = arith.addf %58, %61 : vector<16x4x1xf32>
      %63 = math.rsqrt %62 : vector<16x4x1xf32>
      %64 = vector.broadcast %63 : vector<16x4x1xf32> to vector<16x4x128xf32>
      %65 = arith.mulf %60, %64 : vector<16x4x128xf32>
      %66 = vector.shape_cast %45 : vector<128xf32> to vector<1x1x128xf32>
      %67 = vector.broadcast %66 : vector<1x1x128xf32> to vector<16x4x128xf32>
      %68 = arith.mulf %65, %67 : vector<16x4x128xf32>
      %69 = vector.shape_cast %47 : vector<128xf32> to vector<1x1x128xf32>
      %70 = vector.broadcast %69 : vector<1x1x128xf32> to vector<16x4x128xf32>
      %71 = arith.addf %68, %70 : vector<16x4x128xf32>
      %cst_37 = arith.constant 5.000000e-01 : f32
      %72 = vector.broadcast %cst_37 : f32 to vector<16x4x128xf32>
      %73 = arith.mulf %72, %71 : vector<16x4x128xf32>
      %cst_38 = arith.constant 0.707106769 : f32
      %74 = vector.broadcast %cst_38 : f32 to vector<16x4x128xf32>
      %75 = arith.mulf %71, %74 : vector<16x4x128xf32>
      %76 = math.erf %75 : vector<16x4x128xf32>
      %cst_39 = arith.constant 1.000000e+00 : f32
      %77 = vector.broadcast %cst_39 : f32 to vector<16x4x128xf32>
      %78 = arith.addf %77, %76 : vector<16x4x128xf32>
      %79 = arith.mulf %73, %78 : vector<16x4x128xf32>
      %c0_40 = arith.constant 0 : index
      %c0_41 = arith.constant 0 : index
      %c0_42 = arith.constant 0 : index
      %80 = vector.load %arg7[%c0_40, %c0_41, %c0_42] : memref<16x4x128xf32, #tpu.memory_space<vmem>>, vector<16x4x128xf32>
      tpu.vector_store %arg7[%c0_40, %c0_41, %c0_42], %79 {strides = array<i32>} : memref<16x4x128xf32, #tpu.memory_space<vmem>>, vector<16x4x128xf32>,
    } else {
    }
    return
  }
  func.func @transform_0(%arg0: i32, %arg1: i32) -> (i32, i32, i32) {
    %c0_i32 = arith.constant 0 : i32
    %c0_i32_0 = arith.constant 0 : i32
    %c0_i32_1 = arith.constant 0 : i32
    return %arg0, %c0_i32, %c0_i32_0 : i32, i32, i32
  }
  func.func @transform_1(%arg0: i32, %arg1: i32) -> (i32, i32, i32) {
    %c0_i32 = arith.constant 0 : i32
    %c0_i32_0 = arith.constant 0 : i32
    return %arg0, %arg1, %c0_i32 : i32, i32, i32
  }
  func.func @transform_2(%arg0: i32, %arg1: i32) -> (i32, i32, i32) {
    %c0_i32 = arith.constant 0 : i32
    %c0_i32_0 = arith.constant 0 : i32
    %c0_i32_1 = arith.constant 0 : i32
    return %arg0, %c0_i32, %c0_i32_0 : i32, i32, i32
  }
  func.func @transform_3(%arg0: i32, %arg1: i32) -> (i32, i32) {
    %c0_i32 = arith.constant 0 : i32
    %c0_i32_0 = arith.constant 0 : i32
    %c0_i32_1 = arith.constant 0 : i32
    return %c0_i32, %c0_i32_0 : i32, i32
  }
  func.func @transform_4(%arg0: i32, %arg1: i32) -> (i32, i32) {
    %c0_i32 = arith.constant 0 : i32
    %c0_i32_0 = arith.constant 0 : i32
    %c0_i32_1 = arith.constant 0 : i32
    return %c0_i32, %c0_i32_0 : i32, i32
  }
  func.func @transform_5(%arg0: i32, %arg1: i32) -> (i32, i32, i32) {
    %c0_i32 = arith.constant 0 : i32
    %c0_i32_0 = arith.constant 0 : i32
    %c0_i32_1 = arith.constant 0 : i32
    return %arg0, %c0_i32, %c0_i32_0 : i32, i32, i32
  }
}

</mosaic_0001>

<llo_original>
// kernel: be_layer_forward.1
$region0: #{be_layer_forward.1}
  #allocation0 [shape = 'u32[]', space=smem, size = 0x4, offset = 0x4, fixed_abs, tag = 'smem constant byte address 0x4 - core index']
  #allocation1 [shape = 'u32[144,128]{1,0:T(1,128)}', space=vmem, size = 0x12000, scoped, tag = 'internal scratch']
  #allocation2 [shape = 'f32[16,4,128]{2,1,0:T(4,128)}', space=vmem, size = 0x8000, scoped, tag = 'scratch operand']
  %s0 = inlined_call_operand.hbm [shape: f32[16,4,128], index: 0, kind: input, shape index: {}]
  %s1 = inlined_call_operand.hbm [shape: bf16[16,128,128], index: 1, kind: input, shape index: {}]
  %s2 = inlined_call_operand.hbm [shape: f32[16,4,128], index: 2, kind: input, shape index: {}]
  %s3 = inlined_call_operand.vmem [shape: f32[2,128], index: 3, kind: input, shape index: {}]
  %s4 = inlined_call_operand.vmem [shape: f32[2,128], index: 4, kind: input, shape index: {}]
  %s5 = inlined_call_operand.hbm [shape: f32[16,4,128], index: 5, kind: output, shape index: {}]
  %s6 = sld [smem:[#allocation0]]
  $region50: #{be_layer_forward.1} parent=0
    _
  %s8 = ssub.s32 1, %s6
  %s9 = scalar_select 0, %s8, %s6
  $region1: #{be_layer_forward.1} parent=0
    #allocation3 [shape = 'u8[32768]{0}', space=vmem, size = 0x8000, scoped, tag = 'input window, operand 0, single buffered']
    #allocation4 [shape = 's32[1]{0}', space=sflag, size = 0x4, scoped, tag = 'scoped memory for be_layer_forward.1']
    #allocation5 [shape = 's32[1]{0}', space=sflag, size = 0x4, scoped, tag = 'scoped memory for be_layer_forward.1']
    #allocation6 [shape = 'u8[524288]{0}', space=vmem, size = 0x80000, scoped, tag = 'input window, operand 1, single buffered']
    #allocation7 [shape = 's32[1]{0}', space=sflag, size = 0x4, scoped, tag = 'scoped memory for be_layer_forward.1']
    #allocation8 [shape = 'u8[32768]{0}', space=vmem, size = 0x8000, scoped, tag = 'input window, operand 2, single buffered']
    #allocation9 [shape = 'u8[32768]{0}', space=vmem, size = 0x8000, scoped, tag = 'output window, operand 0, single buffered']
    %10 = vsyncpa [#allocation4], 0
    %11 = vsyncpa [#allocation7], 0
    %12 = vsyncpa [#allocation5], 0
    // Predicated region
    $region2: #{be_layer_forward.1} parent=1 // pred_check
      _
    $region3: #{be_layer_forward.1} parent=1 // pred_check_branch
      %14 = sbr.rel (0) target = $region5
    $region4: #{be_layer_forward.1} parent=1 // pred_region
      %s16 = ssub.s32 1024, 1024
      %17 = vsyncadd [#allocation4], %s16
      %s18 = sshll.u32 [#allocation3], 4
      %s19 = int_to_ptr.vmem [resolvable:$true] %s18
      %24 = dma.hbm_to_vmem [thread:$0]  %s0, 1024, %s19, [#allocation4], 64, 64, 4
    $region5: #{be_layer_forward.1} parent=1 // pred_fallthru
      _
    // Predicated region
    $region6: #{be_layer_forward.1} parent=1 // pred_check
      _
    $region7: #{be_layer_forward.1} parent=1 // pred_check_branch
      %26 = sbr.rel (0) target = $region9
    $region8: #{be_layer_forward.1} parent=1 // pred_region
      %s28 = ssub.s32 16384, 16384
      %29 = vsyncadd [#allocation7], %s28
      %s30 = sshll.u32 [#allocation6], 4
      %s31 = int_to_ptr.vmem [resolvable:$true] %s30
      %36 = dma.hbm_to_vmem [thread:$0]  %s1, 16384, %s31, [#allocation7], 64, 64, 4
    $region9: #{be_layer_forward.1} parent=1 // pred_fallthru
      _
    // Predicated region
    $region10: #{be_layer_forward.1} parent=1 // pred_check
      _
    $region11: #{be_layer_forward.1} parent=1 // pred_check_branch
      %38 = sbr.rel (0) target = $region13
    $region12: #{be_layer_forward.1} parent=1 // pred_region
      %s40 = ssub.s32 1024, 1024
      %41 = vsyncadd [#allocation7], %s40
      %s42 = sshll.u32 [#allocation8], 4
      %s43 = int_to_ptr.vmem [resolvable:$true] %s42
      %48 = dma.hbm_to_vmem [thread:$0]  %s2, 1024, %s43, [#allocation7], 64, 64, 4
    $region13: #{be_layer_forward.1} parent=1 // pred_fallthru
      _
    // Predicated region
    $region14: #{be_layer_forward.1} parent=1 // pred_check
      _
    $region15: #{be_layer_forward.1} parent=1 // pred_check_branch
      %50 = sbr.rel (0) target = $region17
    $region16: #{be_layer_forward.1} parent=1 // pred_region
      _
    $region17: #{be_layer_forward.1} parent=1 // pred_fallthru
      _
    // Predicated region
    $region18: #{be_layer_forward.1} parent=1 // pred_check
      _
    $region19: #{be_layer_forward.1} parent=1 // pred_check_branch
      %52 = sbr.rel (0) target = $region21
    $region20: #{be_layer_forward.1} parent=1 // pred_region
      _
    $region21: #{be_layer_forward.1} parent=1 // pred_fallthru
      _
    // Predicated region
    $region22: #{be_layer_forward.1} parent=1 // pred_check
      _
    $region23: #{be_layer_forward.1} parent=1 // pred_check_branch
      %54 = sbr.rel (0) target = $region25
    $region24: #{be_layer_forward.1} parent=1 // pred_region
      %55 = dma.done [#allocation4], 1024
    $region25: #{be_layer_forward.1} parent=1 // pred_fallthru
      _
    // Predicated region
    $region26: #{be_layer_forward.1} parent=1 // pred_check
      _
    $region27: #{be_layer_forward.1} parent=1 // pred_check_branch
      %57 = sbr.rel (0) target = $region29
    $region28: #{be_layer_forward.1} parent=1 // pred_region
      %58 = dma.done [#allocation7], 16384
    $region29: #{be_layer_forward.1} parent=1 // pred_fallthru
      _
    // Predicated region
    $region30: #{be_layer_forward.1} parent=1 // pred_check
      _
    $region31: #{be_layer_forward.1} parent=1 // pred_check_branch
      %60 = sbr.rel (0) target = $region33
    $region32: #{be_layer_forward.1} parent=1 // pred_region
      %61 = dma.done [#allocation7], 1024
    $region33: #{be_layer_forward.1} parent=1 // pred_fallthru
      _
    %p63 = scmp.eq.s32.totalorder 0, 0
    // Predicated region
    $region34: #{be_layer_forward.1} parent=1 // pred_check
      %p64 = pneg %p63
    $region35: #{be_layer_forward.1} parent=1 // pred_check_branch
      %66 = sbr.rel (%p64) target = $region37
    $region36: #{be_layer_forward.1} parent=1 // pred_region
      %67 = vst [vmem:[#allocation2] sm:$0xf] 0.0
      %68 = vst [vmem:[#allocation2 + $0x4] sm:$0xf] 0.0
      %69 = vst [vmem:[#allocation2 + $0x8] sm:$0xf] 0.0
      %70 = vst [vmem:[#allocation2 + $0xc] sm:$0xf] 0.0
      %71 = vst [vmem:[#allocation2 + $0x10] sm:$0xf] 0.0
      %72 = vst [vmem:[#allocation2 + $0x14] sm:$0xf] 0.0
      %73 = vst [vmem:[#allocation2 + $0x18] sm:$0xf] 0.0
      %74 = vst [vmem:[#allocation2 + $0x1c] sm:$0xf] 0.0
      %75 = vst [vmem:[#allocation2 + $0x20] sm:$0xf] 0.0
      %76 = vst [vmem:[#allocation2 + $0x24] sm:$0xf] 0.0
      %77 = vst [vmem:[#allocation2 + $0x28] sm:$0xf] 0.0
      %78 = vst [vmem:[#allocation2 + $0x2c] sm:$0xf] 0.0
      %79 = vst [vmem:[#allocation2 + $0x30] sm:$0xf] 0.0
      %80 = vst [vmem:[#allocation2 + $0x34] sm:$0xf] 0.0
      %81 = vst [vmem:[#allocation2 + $0x38] sm:$0xf] 0.0
      %82 = vst [vmem:[#allocation2 + $0x3c] sm:$0xf] 0.0
    $region37: #{be_layer_forward.1} parent=1 // pred_fallthru
      _
    %v83 = vld [vmem:[#allocation3] sm:$0xf]
    %v84 = vld [vmem:[#allocation3 + $0x4] sm:$0xf]
    %v85 = vld [vmem:[#allocation3 + $0x8] sm:$0xf]
    %v86 = vld [vmem:[#allocation3 + $0xc] sm:$0xf]
    %v87 = vld [vmem:[#allocation3 + $0x10] sm:$0xf]
    %v88 = vld [vmem:[#allocation3 + $0x14] sm:$0xf]
    %v89 = vld [vmem:[#allocation3 + $0x18] sm:$0xf]
    %v90 = vld [vmem:[#allocation3 + $0x1c] sm:$0xf]
    %v91 = vld [vmem:[#allocation3 + $0x20] sm:$0xf]
    %v92 = vld [vmem:[#allocation3 + $0x24] sm:$0xf]
    %v93 = vld [vmem:[#allocation3 + $0x28] sm:$0xf]
    %v94 = vld [vmem:[#allocation3 + $0x2c] sm:$0xf]
    %v95 = vld [vmem:[#allocation3 + $0x30] sm:$0xf]
    %v96 = vld [vmem:[#allocation3 + $0x34] sm:$0xf]
    %v97 = vld [vmem:[#allocation3 + $0x38] sm:$0xf]
    %v98 = vld [vmem:[#allocation3 + $0x3c] sm:$0xf]
    %vm99 = vcmask 1043456
    %v100 = vsel %vm99, %v83, 0.0
    %101 = vadd.xlane.f32.xlu0 %v100
    %v102 = vpop.xlane.xlu0 %101
    %v103 = vsel %vm99, %v84, 0.0
    %104 = vadd.xlane.f32.xlu0 %v103
    %v105 = vpop.xlane.xlu0 %104
    %v106 = vsel %vm99, %v85, 0.0
    %107 = vadd.xlane.f32.xlu0 %v106
    %v108 = vpop.xlane.xlu0 %107
    %v109 = vsel %vm99, %v86, 0.0
    %110 = vadd.xlane.f32.xlu0 %v109
    %v111 = vpop.xlane.xlu0 %110
    %v112 = vsel %vm99, %v87, 0.0
    %113 = vadd.xlane.f32.xlu0 %v112
    %v114 = vpop.xlane.xlu0 %113
    %v115 = vsel %vm99, %v88, 0.0
    %116 = vadd.xlane.f32.xlu0 %v115
    %v117 = vpop.xlane.xlu0 %116
    %v118 = vsel %vm99, %v89, 0.0
    %119 = vadd.xlane.f32.xlu0 %v118
    %v120 = vpop.xlane.xlu0 %119
    %v121 = vsel %vm99, %v90, 0.0
    %122 = vadd.xlane.f32.xlu0 %v121
    %v123 = vpop.xlane.xlu0 %122
    %v124 = vsel %vm99, %v91, 0.0
    %125 = vadd.xlane.f32.xlu0 %v124
    %v126 = vpop.xlane.xlu0 %125
    %v127 = vsel %vm99, %v92, 0.0
    %128 = vadd.xlane.f32.xlu0 %v127
    %v129 = vpop.xlane.xlu0 %128
    %v130 = vsel %vm99, %v93, 0.0
    %131 = vadd.xlane.f32.xlu0 %v130
    %v132 = vpop.xlane.xlu0 %131
    %v133 = vsel %vm99, %v94, 0.0
    %134 = vadd.xlane.f32.xlu0 %v133
    %v135 = vpop.xlane.xlu0 %134
    %v136 = vsel %vm99, %v95, 0.0
    %137 = vadd.xlane.f32.xlu0 %v136
    %v138 = vpop.xlane.xlu0 %137
    %v139 = vsel %vm99, %v96, 0.0
    %140 = vadd.xlane.f32.xlu0 %v139
    %v141 = vpop.xlane.xlu0 %140
    %v142 = vsel %vm99, %v97, 0.0
    %143 = vadd.xlane.f32.xlu0 %v142
    %v144 = vpop.xlane.xlu0 %143
    %v145 = vsel %vm99, %v98, 0.0
    %146 = vadd.xlane.f32.xlu0 %v145
    %v147 = vpop.xlane.xlu0 %146
    %v148 = vrcp.pop 128.0
    %v149 = vmul.f32 %v102, %v148
    %v150 = vmul.f32 %v105, %v148
    %v151 = vmul.f32 %v108, %v148
    %v152 = vmul.f32 %v111, %v148
    %v153 = vmul.f32 %v114, %v148
    %v154 = vmul.f32 %v117, %v148
    %v155 = vmul.f32 %v120, %v148
    %v156 = vmul.f32 %v123, %v148
    %v157 = vmul.f32 %v126, %v148
    %v158 = vmul.f32 %v129, %v148
    %v159 = vmul.f32 %v132, %v148
    %v160 = vmul.f32 %v135, %v148
    %v161 = vmul.f32 %v138, %v148
    %v162 = vmul.f32 %v141, %v148
    %v163 = vmul.f32 %v144, %v148
    %v164 = vmul.f32 %v147, %v148
    %v165 = vsub.f32 %v83, %v149
    %v166 = vsub.f32 %v84, %v150
    %v167 = vsub.f32 %v85, %v151
    %v168 = vsub.f32 %v86, %v152
    %v169 = vsub.f32 %v87, %v153
    %v170 = vsub.f32 %v88, %v154
    %v171 = vsub.f32 %v89, %v155
    %v172 = vsub.f32 %v90, %v156
    %v173 = vsub.f32 %v91, %v157
    %v174 = vsub.f32 %v92, %v158
    %v175 = vsub.f32 %v93, %v159
    %v176 = vsub.f32 %v94, %v160
    %v177 = vsub.f32 %v95, %v161
    %v178 = vsub.f32 %v96, %v162
    %v179 = vsub.f32 %v97, %v163
    %v180 = vsub.f32 %v98, %v164
    %v181 = vmul.f32 %v165, %v165
    %v182 = vmul.f32 %v166, %v166
    %v183 = vmul.f32 %v167, %v167
    %v184 = vmul.f32 %v168, %v168
    %v185 = vmul.f32 %v169, %v169
    %v186 = vmul.f32 %v170, %v170
    %v187 = vmul.f32 %v171, %v171
    %v188 = vmul.f32 %v172, %v172
    %v189 = vmul.f32 %v173, %v173
    %v190 = vmul.f32 %v174, %v174
    %v191 = vmul.f32 %v175, %v175
    %v192 = vmul.f32 %v176, %v176
    %v193 = vmul.f32 %v177, %v177
    %v194 = vmul.f32 %v178, %v178
    %v195 = vmul.f32 %v179, %v179
    %v196 = vmul.f32 %v180, %v180
    %v197 = vsel %vm99, %v181, 0.0
    %198 = vadd.xlane.f32.xlu0 %v197
    %v199 = vpop.xlane.xlu0 %198
    %v200 = vsel %vm99, %v182, 0.0
    %201 = vadd.xlane.f32.xlu0 %v200
    %v202 = vpop.xlane.xlu0 %201
    %v203 = vsel %vm99, %v183, 0.0
    %204 = vadd.xlane.f32.xlu0 %v203
    %v205 = vpop.xlane.xlu0 %204
    %v206 = vsel %vm99, %v184, 0.0
    %207 = vadd.xlane.f32.xlu0 %v206
    %v208 = vpop.xlane.xlu0 %207
    %v209 = vsel %vm99, %v185, 0.0
    %210 = vadd.xlane.f32.xlu0 %v209
    %v211 = vpop.xlane.xlu0 %210
    %v212 = vsel %vm99, %v186, 0.0
    %213 = vadd.xlane.f32.xlu0 %v212
    %v214 = vpop.xlane.xlu0 %213
    %v215 = vsel %vm99, %v187, 0.0
    %216 = vadd.xlane.f32.xlu0 %v215
    %v217 = vpop.xlane.xlu0 %216
    %v218 = vsel %vm99, %v188, 0.0
    %219 = vadd.xlane.f32.xlu0 %v218
    %v220 = vpop.xlane.xlu0 %219
    %v221 = vsel %vm99, %v189, 0.0
    %222 = vadd.xlane.f32.xlu0 %v221
    %v223 = vpop.xlane.xlu0 %222
    %v224 = vsel %vm99, %v190, 0.0
    %225 = vadd.xlane.f32.xlu0 %v224
    %v226 = vpop.xlane.xlu0 %225
    %v227 = vsel %vm99, %v191, 0.0
    %228 = vadd.xlane.f32.xlu0 %v227
    %v229 = vpop.xlane.xlu0 %228
    %v230 = vsel %vm99, %v192, 0.0
    %231 = vadd.xlane.f32.xlu0 %v230
    %v232 = vpop.xlane.xlu0 %231
    %v233 = vsel %vm99, %v193, 0.0
    %234 = vadd.xlane.f32.xlu0 %v233
    %v235 = vpop.xlane.xlu0 %234
    %v236 = vsel %vm99, %v194, 0.0
    %237 = vadd.xlane.f32.xlu0 %v236
    %v238 = vpop.xlane.xlu0 %237
    %v239 = vsel %vm99, %v195, 0.0
    %240 = vadd.xlane.f32.xlu0 %v239
    %v241 = vpop.xlane.xlu0 %240
    %v242 = vsel %vm99, %v196, 0.0
    %243 = vadd.xlane.f32.xlu0 %v242
    %v244 = vpop.xlane.xlu0 %243
    %v245 = vmul.f32 %v199, %v148
    %v246 = vmul.f32 %v202, %v148
    %v247 = vmul.f32 %v205, %v148
    %v248 = vmul.f32 %v208, %v148
    %v249 = vmul.f32 %v211, %v148
    %v250 = vmul.f32 %v214, %v148
    %v251 = vmul.f32 %v217, %v148
    %v252 = vmul.f32 %v220, %v148
    %v253 = vmul.f32 %v223, %v148
    %v254 = vmul.f32 %v226, %v148
    %v255 = vmul.f32 %v229, %v148
    %v256 = vmul.f32 %v232, %v148
    %v257 = vmul.f32 %v235, %v148
    %v258 = vmul.f32 %v238, %v148
    %v259 = vmul.f32 %v241, %v148
    %v260 = vmul.f32 %v244, %v148
    %v261 = vadd.f32 %v245, 1e-05
    %v262 = vadd.f32 %v246, 1e-05
    %v263 = vadd.f32 %v247, 1e-05
    %v264 = vadd.f32 %v248, 1e-05
    %v265 = vadd.f32 %v249, 1e-05
    %v266 = vadd.f32 %v250, 1e-05
    %v267 = vadd.f32 %v251, 1e-05
    %v268 = vadd.f32 %v252, 1e-05
    %v269 = vadd.f32 %v253, 1e-05
    %v270 = vadd.f32 %v254, 1e-05
    %v271 = vadd.f32 %v255, 1e-05
    %v272 = vadd.f32 %v256, 1e-05
    %v273 = vadd.f32 %v257, 1e-05
    %v274 = vadd.f32 %v258, 1e-05
    %v275 = vadd.f32 %v259, 1e-05
    %v276 = vadd.f32 %v260, 1e-05
    %v277 = vrsqrt.pop %v261
    %v278 = vrsqrt.pop %v262
    %v279 = vrsqrt.pop %v263
    %v280 = vrsqrt.pop %v264
    %v281 = vrsqrt.pop %v265
    %v282 = vrsqrt.pop %v266
    %v283 = vrsqrt.pop %v267
    %v284 = vrsqrt.pop %v268
    %v285 = vrsqrt.pop %v269
    %v286 = vrsqrt.pop %v270
    %v287 = vrsqrt.pop %v271
    %v288 = vrsqrt.pop %v272
    %v289 = vrsqrt.pop %v273
    %v290 = vrsqrt.pop %v274
    %v291 = vrsqrt.pop %v275
    %v292 = vrsqrt.pop %v276
    %v293 = vld [vmem:[%s3] sm:$0x1]
    %v294 = vld [vmem:[%s3 + $0x1] sm:$0x1]
    %v295 = vmul.f32 %v165, %v277
    %v296 = vmul.f32 %v166, %v278
    %v297 = vmul.f32 %v167, %v279
    %v298 = vmul.f32 %v168, %v280
    %v299 = vmul.f32 %v169, %v281
    %v300 = vmul.f32 %v170, %v282
    %v301 = vmul.f32 %v171, %v283
    %v302 = vmul.f32 %v172, %v284
    %v303 = vmul.f32 %v173, %v285
    %v304 = vmul.f32 %v174, %v286
    %v305 = vmul.f32 %v175, %v287
    %v306 = vmul.f32 %v176, %v288
    %v307 = vmul.f32 %v177, %v289
    %v308 = vmul.f32 %v178, %v290
    %v309 = vmul.f32 %v179, %v291
    %v310 = vmul.f32 %v180, %v292
    %v311 = vlaneseq
    %v312 = vshrl.u32 %v311, 7
    %v313 = vsub.s32 0, %v312
    %v314 = vrot.slane %v293, %v313
    %v315 = vmul.f32 %v295, %v314
    %v316 = vmul.f32 %v296, %v314
    %v317 = vmul.f32 %v297, %v314
    %v318 = vmul.f32 %v298, %v314
    %v319 = vmul.f32 %v299, %v314
    %v320 = vmul.f32 %v300, %v314
    %v321 = vmul.f32 %v301, %v314
    %v322 = vmul.f32 %v302, %v314
    %v323 = vmul.f32 %v303, %v314
    %v324 = vmul.f32 %v304, %v314
    %v325 = vmul.f32 %v305, %v314
    %v326 = vmul.f32 %v306, %v314
    %v327 = vmul.f32 %v307, %v314
    %v328 = vmul.f32 %v308, %v314
    %v329 = vmul.f32 %v309, %v314
    %v330 = vmul.f32 %v310, %v314
    %v331 = vlaneseq
    %v332 = vshrl.u32 %v331, 7
    %v333 = vsub.s32 0, %v332
    %v334 = vrot.slane %v294, %v333
    %v335 = vadd.f32 %v315, %v334
    %v336 = vadd.f32 %v316, %v334
    %v337 = vadd.f32 %v317, %v334
    %v338 = vadd.f32 %v318, %v334
    %v339 = vadd.f32 %v319, %v334
    %v340 = vadd.f32 %v320, %v334
    %v341 = vadd.f32 %v321, %v334
    %v342 = vadd.f32 %v322, %v334
    %v343 = vadd.f32 %v323, %v334
    %v344 = vadd.f32 %v324, %v334
    %v345 = vadd.f32 %v325, %v334
    %v346 = vadd.f32 %v326, %v334
    %v347 = vadd.f32 %v327, %v334
    %v348 = vadd.f32 %v328, %v334
    %v349 = vadd.f32 %v329, %v334
    %v350 = vadd.f32 %v330, %v334
    %v351 = vld [vmem:[#allocation2] sm:$0xf]
    %v352 = vld [vmem:[#allocation2 + $0x4] sm:$0xf]
    %v353 = vld [vmem:[#allocation2 + $0x8] sm:$0xf]
    %v354 = vld [vmem:[#allocation2 + $0xc] sm:$0xf]
    %v355 = vld [vmem:[#allocation2 + $0x10] sm:$0xf]
    %v356 = vld [vmem:[#allocation2 + $0x14] sm:$0xf]
    %v357 = vld [vmem:[#allocation2 + $0x18] sm:$0xf]
    %v358 = vld [vmem:[#allocation2 + $0x1c] sm:$0xf]
    %v359 = vld [vmem:[#allocation2 + $0x20] sm:$0xf]
    %v360 = vld [vmem:[#allocation2 + $0x24] sm:$0xf]
    %v361 = vld [vmem:[#allocation2 + $0x28] sm:$0xf]
    %v362 = vld [vmem:[#allocation2 + $0x2c] sm:$0xf]
    %v363 = vld [vmem:[#allocation2 + $0x30] sm:$0xf]
    %v364 = vld [vmem:[#allocation2 + $0x34] sm:$0xf]
    %v365 = vld [vmem:[#allocation2 + $0x38] sm:$0xf]
    %v366 = vld [vmem:[#allocation2 + $0x3c] sm:$0xf]
    %v367 = vpack.c.bf16 %v335, %v335
    %v368 = vpack.c.bf16 %v336, %v336
    %v369 = vpack.c.bf16 %v337, %v337
    %v370 = vpack.c.bf16 %v338, %v338
    %v371 = vpack.c.bf16 %v339, %v339
    %v372 = vpack.c.bf16 %v340, %v340
    %v373 = vpack.c.bf16 %v341, %v341
    %v374 = vpack.c.bf16 %v342, %v342
    %v375 = vpack.c.bf16 %v343, %v343
    %v376 = vpack.c.bf16 %v344, %v344
    %v377 = vpack.c.bf16 %v345, %v345
    %v378 = vpack.c.bf16 %v346, %v346
    %v379 = vpack.c.bf16 %v347, %v347
    %v380 = vpack.c.bf16 %v348, %v348
    %v381 = vpack.c.bf16 %v349, %v349
    %v382 = vpack.c.bf16 %v350, %v350
    %v383 = vld [vmem:[#allocation6] sm:$0xf]
    %v384 = vld [vmem:[#allocation6 + $0x4] sm:$0xf]
    %v385 = vld [vmem:[#allocation6 + $0x8] sm:$0xf]
    %v386 = vld [vmem:[#allocation6 + $0xc] sm:$0xf]
    %v387 = vld [vmem:[#allocation6 + $0x10] sm:$0xf]
    %v388 = vld [vmem:[#allocation6 + $0x14] sm:$0xf]
    %v389 = vld [vmem:[#allocation6 + $0x18] sm:$0xf]
    %v390 = vld [vmem:[#allocation6 + $0x1c] sm:$0xf]
    %v391 = vld [vmem:[#allocation6 + $0x20] sm:$0xf]
    %v392 = vld [vmem:[#allocation6 + $0x24] sm:$0xf]
    %v393 = vld [vmem:[#allocation6 + $0x28] sm:$0xf]
    %v394 = vld [vmem:[#allocation6 + $0x2c] sm:$0xf]
    %v395 = vld [vmem:[#allocation6 + $0x30] sm:$0xf]
    %v396 = vld [vmem:[#allocation6 + $0x34] sm:$0xf]
    %v397 = vld [vmem:[#allocation6 + $0x38] sm:$0xf]
    %v398 = vld [vmem:[#allocation6 + $0x3c] sm:$0xf]
    %v399 = vld [vmem:[#allocation6 + $0x40] sm:$0xf]
    %v400 = vld [vmem:[#allocation6 + $0x44] sm:$0xf]
    %v401 = vld [vmem:[#allocation6 + $0x48] sm:$0xf]
    %v402 = vld [vmem:[#allocation6 + $0x4c] sm:$0xf]
    %v403 = vld [vmem:[#allocation6 + $0x50] sm:$0xf]
    %v404 = vld [vmem:[#allocation6 + $0x54] sm:$0xf]
    %v405 = vld [vmem:[#allocation6 + $0x58] sm:$0xf]
    %v406 = vld [vmem:[#allocation6 + $0x5c] sm:$0xf]
    %v407 = vld [vmem:[#allocation6 + $0x60] sm:$0xf]
    %v408 = vld [vmem:[#allocation6 + $0x64] sm:$0xf]
    %v409 = vld [vmem:[#allocation6 + $0x68] sm:$0xf]
    %v410 = vld [vmem:[#allocation6 + $0x6c] sm:$0xf]
    %v411 = vld [vmem:[#allocation6 + $0x70] sm:$0xf]
    %v412 = vld [vmem:[#allocation6 + $0x74] sm:$0xf]
    %v413 = vld [vmem:[#allocation6 + $0x78] sm:$0xf]
    %v414 = vld [vmem:[#allocation6 + $0x7c] sm:$0xf]
    %v415 = vld [vmem:[#allocation6 + $0x80] sm:$0xf]
    %v416 = vld [vmem:[#allocation6 + $0x84] sm:$0xf]
    %v417 = vld [vmem:[#allocation6 + $0x88] sm:$0xf]
    %v418 = vld [vmem:[#allocation6 + $0x8c] sm:$0xf]
    %v419 = vld [vmem:[#allocation6 + $0x90] sm:$0xf]
    %v420 = vld [vmem:[#allocation6 + $0x94] sm:$0xf]
    %v421 = vld [vmem:[#allocation6 + $0x98] sm:$0xf]
    %v422 = vld [vmem:[#allocation6 + $0x9c] sm:$0xf]
    %v423 = vld [vmem:[#allocation6 + $0xa0] sm:$0xf]
    %v424 = vld [vmem:[#allocation6 + $0xa4] sm:$0xf]
    %v425 = vld [vmem:[#allocation6 + $0xa8] sm:$0xf]
    %v426 = vld [vmem:[#allocation6 + $0xac] sm:$0xf]
    %v427 = vld [vmem:[#allocation6 + $0xb0] sm:$0xf]
    %v428 = vld [vmem:[#allocation6 + $0xb4] sm:$0xf]
    %v429 = vld [vmem:[#allocation6 + $0xb8] sm:$0xf]
    %v430 = vld [vmem:[#allocation6 + $0xbc] sm:$0xf]
    %v431 = vld [vmem:[#allocation6 + $0xc0] sm:$0xf]
    %v432 = vld [vmem:[#allocation6 + $0xc4] sm:$0xf]
    %v433 = vld [vmem:[#allocation6 + $0xc8] sm:$0xf]
    %v434 = vld [vmem:[#allocation6 + $0xcc] sm:$0xf]
    %v435 = vld [vmem:[#allocation6 + $0xd0] sm:$0xf]
    %v436 = vld [vmem:[#allocation6 + $0xd4] sm:$0xf]
    %v437 = vld [vmem:[#allocation6 + $0xd8] sm:$0xf]
    %v438 = vld [vmem:[#allocation6 + $0xdc] sm:$0xf]
    %v439 = vld [vmem:[#allocation6 + $0xe0] sm:$0xf]
    %v440 = vld [vmem:[#allocation6 + $0xe4] sm:$0xf]
    %v441 = vld [vmem:[#allocation6 + $0xe8] sm:$0xf]
    %v442 = vld [vmem:[#allocation6 + $0xec] sm:$0xf]
    %v443 = vld [vmem:[#allocation6 + $0xf0] sm:$0xf]
    %v444 = vld [vmem:[#allocation6 + $0xf4] sm:$0xf]
    %v445 = vld [vmem:[#allocation6 + $0xf8] sm:$0xf]
    %v446 = vld [vmem:[#allocation6 + $0xfc] sm:$0xf]
    %v447 = vld [vmem:[#allocation6 + $0x100] sm:$0xf]
    %v448 = vld [vmem:[#allocation6 + $0x104] sm:$0xf]
    %v449 = vld [vmem:[#allocation6 + $0x108] sm:$0xf]
    %v450 = vld [vmem:[#allocation6 + $0x10c] sm:$0xf]
    %v451 = vld [vmem:[#allocation6 + $0x110] sm:$0xf]
    %v452 = vld [vmem:[#allocation6 + $0x114] sm:$0xf]
    %v453 = vld [vmem:[#allocation6 + $0x118] sm:$0xf]
    %v454 = vld [vmem:[#allocation6 + $0x11c] sm:$0xf]
    %v455 = vld [vmem:[#allocation6 + $0x120] sm:$0xf]
    %v456 = vld [vmem:[#allocation6 + $0x124] sm:$0xf]
    %v457 = vld [vmem:[#allocation6 + $0x128] sm:$0xf]
    %v458 = vld [vmem:[#allocation6 + $0x12c] sm:$0xf]
    %v459 = vld [vmem:[#allocation6 + $0x130] sm:$0xf]
    %v460 = vld [vmem:[#allocation6 + $0x134] sm:$0xf]
    %v461 = vld [vmem:[#allocation6 + $0x138] sm:$0xf]
    %v462 = vld [vmem:[#allocation6 + $0x13c] sm:$0xf]
    %v463 = vld [vmem:[#allocation6 + $0x140] sm:$0xf]
    %v464 = vld [vmem:[#allocation6 + $0x144] sm:$0xf]
    %v465 = vld [vmem:[#allocation6 + $0x148] sm:$0xf]
    %v466 = vld [vmem:[#allocation6 + $0x14c] sm:$0xf]
    %v467 = vld [vmem:[#allocation6 + $0x150] sm:$0xf]
    %v468 = vld [vmem:[#allocation6 + $0x154] sm:$0xf]
    %v469 = vld [vmem:[#allocation6 + $0x158] sm:$0xf]
    %v470 = vld [vmem:[#allocation6 + $0x15c] sm:$0xf]
    %v471 = vld [vmem:[#allocation6 + $0x160] sm:$0xf]
    %v472 = vld [vmem:[#allocation6 + $0x164] sm:$0xf]
    %v473 = vld [vmem:[#allocation6 + $0x168] sm:$0xf]
    %v474 = vld [vmem:[#allocation6 + $0x16c] sm:$0xf]
    %v475 = vld [vmem:[#allocation6 + $0x170] sm:$0xf]
    %v476 = vld [vmem:[#allocation6 + $0x174] sm:$0xf]
    %v477 = vld [vmem:[#allocation6 + $0x178] sm:$0xf]
    %v478 = vld [vmem:[#allocation6 + $0x17c] sm:$0xf]
    %v479 = vld [vmem:[#allocation6 + $0x180] sm:$0xf]
    %v480 = vld [vmem:[#allocation6 + $0x184] sm:$0xf]
    %v481 = vld [vmem:[#allocation6 + $0x188] sm:$0xf]
    %v482 = vld [vmem:[#allocation6 + $0x18c] sm:$0xf]
    %v483 = vld [vmem:[#allocation6 + $0x190] sm:$0xf]
    %v484 = vld [vmem:[#allocation6 + $0x194] sm:$0xf]
    %v485 = vld [vmem:[#allocation6 + $0x198] sm:$0xf]
    %v486 = vld [vmem:[#allocation6 + $0x19c] sm:$0xf]
    %v487 = vld [vmem:[#allocation6 + $0x1a0] sm:$0xf]
    %v488 = vld [vmem:[#allocation6 + $0x1a4] sm:$0xf]
    %v489 = vld [vmem:[#allocation6 + $0x1a8] sm:$0xf]
    %v490 = vld [vmem:[#allocation6 + $0x1ac] sm:$0xf]
    %v491 = vld [vmem:[#allocation6 + $0x1b0] sm:$0xf]
    %v492 = vld [vmem:[#allocation6 + $0x1b4] sm:$0xf]
    %v493 = vld [vmem:[#allocation6 + $0x1b8] sm:$0xf]
    %v494 = vld [vmem:[#allocation6 + $0x1bc] sm:$0xf]
    %v495 = vld [vmem:[#allocation6 + $0x1c0] sm:$0xf]
    %v496 = vld [vmem:[#allocation6 + $0x1c4] sm:$0xf]
    %v497 = vld [vmem:[#allocation6 + $0x1c8] sm:$0xf]
    %v498 = vld [vmem:[#allocation6 + $0x1cc] sm:$0xf]
    %v499 = vld [vmem:[#allocation6 + $0x1d0] sm:$0xf]
    %v500 = vld [vmem:[#allocation6 + $0x1d4] sm:$0xf]
    %v501 = vld [vmem:[#allocation6 + $0x1d8] sm:$0xf]
    %v502 = vld [vmem:[#allocation6 + $0x1dc] sm:$0xf]
    %v503 = vld [vmem:[#allocation6 + $0x1e0] sm:$0xf]
    %v504 = vld [vmem:[#allocation6 + $0x1e4] sm:$0xf]
    %v505 = vld [vmem:[#allocation6 + $0x1e8] sm:$0xf]
    %v506 = vld [vmem:[#allocation6 + $0x1ec] sm:$0xf]
    %v507 = vld [vmem:[#allocation6 + $0x1f0] sm:$0xf]
    %v508 = vld [vmem:[#allocation6 + $0x1f4] sm:$0xf]
    %v509 = vld [vmem:[#allocation6 + $0x1f8] sm:$0xf]
    %v510 = vld [vmem:[#allocation6 + $0x1fc] sm:$0xf]
    %v511 = vld [vmem:[#allocation6 + $0x200] sm:$0xf]
    %v512 = vld [vmem:[#allocation6 + $0x204] sm:$0xf]
    %v513 = vld [vmem:[#allocation6 + $0x208] sm:$0xf]
    %v514 = vld [vmem:[#allocation6 + $0x20c] sm:$0xf]
    %v515 = vld [vmem:[#allocation6 + $0x210] sm:$0xf]
    %v516 = vld [vmem:[#allocation6 + $0x214] sm:$0xf]
    %v517 = vld [vmem:[#allocation6 + $0x218] sm:$0xf]
    %v518 = vld [vmem:[#allocation6 + $0x21c] sm:$0xf]
    %v519 = vld [vmem:[#allocation6 + $0x220] sm:$0xf]
    %v520 = vld [vmem:[#allocation6 + $0x224] sm:$0xf]
    %v521 = vld [vmem:[#allocation6 + $0x228] sm:$0xf]
    %v522 = vld [vmem:[#allocation6 + $0x22c] sm:$0xf]
    %v523 = vld [vmem:[#allocation6 + $0x230] sm:$0xf]
    %v524 = vld [vmem:[#allocation6 + $0x234] sm:$0xf]
    %v525 = vld [vmem:[#allocation6 + $0x238] sm:$0xf]
    %v526 = vld [vmem:[#allocation6 + $0x23c] sm:$0xf]
    %v527 = vld [vmem:[#allocation6 + $0x240] sm:$0xf]
    %v528 = vld [vmem:[#allocation6 + $0x244] sm:$0xf]
    %v529 = vld [vmem:[#allocation6 + $0x248] sm:$0xf]
    %v530 = vld [vmem:[#allocation6 + $0x24c] sm:$0xf]
    %v531 = vld [vmem:[#allocation6 + $0x250] sm:$0xf]
    %v532 = vld [vmem:[#allocation6 + $0x254] sm:$0xf]
    %v533 = vld [vmem:[#allocation6 + $0x258] sm:$0xf]
    %v534 = vld [vmem:[#allocation6 + $0x25c] sm:$0xf]
    %v535 = vld [vmem:[#allocation6 + $0x260] sm:$0xf]
    %v536 = vld [vmem:[#allocation6 + $0x264] sm:$0xf]
    %v537 = vld [vmem:[#allocation6 + $0x268] sm:$0xf]
    %v538 = vld [vmem:[#allocation6 + $0x26c] sm:$0xf]
    %v539 = vld [vmem:[#allocation6 + $0x270] sm:$0xf]
    %v540 = vld [vmem:[#allocation6 + $0x274] sm:$0xf]
    %v541 = vld [vmem:[#allocation6 + $0x278] sm:$0xf]
    %v542 = vld [vmem:[#allocation6 + $0x27c] sm:$0xf]
    %v543 = vld [vmem:[#allocation6 + $0x280] sm:$0xf]
    %v544 = vld [vmem:[#allocation6 + $0x284] sm:$0xf]
    %v545 = vld [vmem:[#allocation6 + $0x288] sm:$0xf]
    %v546 = vld [vmem:[#allocation6 + $0x28c] sm:$0xf]
    %v547 = vld [vmem:[#allocation6 + $0x290] sm:$0xf]
    %v548 = vld [vmem:[#allocation6 + $0x294] sm:$0xf]
    %v549 = vld [vmem:[#allocation6 + $0x298] sm:$0xf]
    %v550 = vld [vmem:[#allocation6 + $0x29c] sm:$0xf]
    %v551 = vld [vmem:[#allocation6 + $0x2a0] sm:$0xf]
    %v552 = vld [vmem:[#allocation6 + $0x2a4] sm:$0xf]
    %v553 = vld [vmem:[#allocation6 + $0x2a8] sm:$0xf]
    %v554 = vld [vmem:[#allocation6 + $0x2ac] sm:$0xf]
    %v555 = vld [vmem:[#allocation6 + $0x2b0] sm:$0xf]
    %v556 = vld [vmem:[#allocation6 + $0x2b4] sm:$0xf]
    %v557 = vld [vmem:[#allocation6 + $0x2b8] sm:$0xf]
    %v558 = vld [vmem:[#allocation6 + $0x2bc] sm:$0xf]
    %v559 = vld [vmem:[#allocation6 + $0x2c0] sm:$0xf]
    %v560 = vld [vmem:[#allocation6 + $0x2c4] sm:$0xf]
    %v561 = vld [vmem:[#allocation6 + $0x2c8] sm:$0xf]
    %v562 = vld [vmem:[#allocation6 + $0x2cc] sm:$0xf]
    %v563 = vld [vmem:[#allocation6 + $0x2d0] sm:$0xf]
    %v564 = vld [vmem:[#allocation6 + $0x2d4] sm:$0xf]
    %v565 = vld [vmem:[#allocation6 + $0x2d8] sm:$0xf]
    %v566 = vld [vmem:[#allocation6 + $0x2dc] sm:$0xf]
    %v567 = vld [vmem:[#allocation6 + $0x2e0] sm:$0xf]
    %v568 = vld [vmem:[#allocation6 + $0x2e4] sm:$0xf]
    %v569 = vld [vmem:[#allocation6 + $0x2e8] sm:$0xf]
    %v570 = vld [vmem:[#allocation6 + $0x2ec] sm:$0xf]
    %v571 = vld [vmem:[#allocation6 + $0x2f0] sm:$0xf]
    %v572 = vld [vmem:[#allocation6 + $0x2f4] sm:$0xf]
    %v573 = vld [vmem:[#allocation6 + $0x2f8] sm:$0xf]
    %v574 = vld [vmem:[#allocation6 + $0x2fc] sm:$0xf]
    %v575 = vld [vmem:[#allocation6 + $0x300] sm:$0xf]
    %v576 = vld [vmem:[#allocation6 + $0x304] sm:$0xf]
    %v577 = vld [vmem:[#allocation6 + $0x308] sm:$0xf]
    %v578 = vld [vmem:[#allocation6 + $0x30c] sm:$0xf]
    %v579 = vld [vmem:[#allocation6 + $0x310] sm:$0xf]
    %v580 = vld [vmem:[#allocation6 + $0x314] sm:$0xf]
    %v581 = vld [vmem:[#allocation6 + $0x318] sm:$0xf]
    %v582 = vld [vmem:[#allocation6 + $0x31c] sm:$0xf]
    %v583 = vld [vmem:[#allocation6 + $0x320] sm:$0xf]
    %v584 = vld [vmem:[#allocation6 + $0x324] sm:$0xf]
    %v585 = vld [vmem:[#allocation6 + $0x328] sm:$0xf]
    %v586 = vld [vmem:[#allocation6 + $0x32c] sm:$0xf]
    %v587 = vld [vmem:[#allocation6 + $0x330] sm:$0xf]
    %v588 = vld [vmem:[#allocation6 + $0x334] sm:$0xf]
    %v589 = vld [vmem:[#allocation6 + $0x338] sm:$0xf]
    %v590 = vld [vmem:[#allocation6 + $0x33c] sm:$0xf]
    %v591 = vld [vmem:[#allocation6 + $0x340] sm:$0xf]
    %v592 = vld [vmem:[#allocation6 + $0x344] sm:$0xf]
    %v593 = vld [vmem:[#allocation6 + $0x348] sm:$0xf]
    %v594 = vld [vmem:[#allocation6 + $0x34c] sm:$0xf]
    %v595 = vld [vmem:[#allocation6 + $0x350] sm:$0xf]
    %v596 = vld [vmem:[#allocation6 + $0x354] sm:$0xf]
    %v597 = vld [vmem:[#allocation6 + $0x358] sm:$0xf]
    %v598 = vld [vmem:[#allocation6 + $0x35c] sm:$0xf]
    %v599 = vld [vmem:[#allocation6 + $0x360] sm:$0xf]
    %v600 = vld [vmem:[#allocation6 + $0x364] sm:$0xf]
    %v601 = vld [vmem:[#allocation6 + $0x368] sm:$0xf]
    %v602 = vld [vmem:[#allocation6 + $0x36c] sm:$0xf]
    %v603 = vld [vmem:[#allocation6 + $0x370] sm:$0xf]
    %v604 = vld [vmem:[#allocation6 + $0x374] sm:$0xf]
    %v605 = vld [vmem:[#allocation6 + $0x378] sm:$0xf]
    %v606 = vld [vmem:[#allocation6 + $0x37c] sm:$0xf]
    %v607 = vld [vmem:[#allocation6 + $0x380] sm:$0xf]
    %v608 = vld [vmem:[#allocation6 + $0x384] sm:$0xf]
    %v609 = vld [vmem:[#allocation6 + $0x388] sm:$0xf]
    %v610 = vld [vmem:[#allocation6 + $0x38c] sm:$0xf]
    %v611 = vld [vmem:[#allocation6 + $0x390] sm:$0xf]
    %v612 = vld [vmem:[#allocation6 + $0x394] sm:$0xf]
    %v613 = vld [vmem:[#allocation6 + $0x398] sm:$0xf]
    %v614 = vld [vmem:[#allocation6 + $0x39c] sm:$0xf]
    %v615 = vld [vmem:[#allocation6 + $0x3a0] sm:$0xf]
    %v616 = vld [vmem:[#allocation6 + $0x3a4] sm:$0xf]
    %v617 = vld [vmem:[#allocation6 + $0x3a8] sm:$0xf]
    %v618 = vld [vmem:[#allocation6 + $0x3ac] sm:$0xf]
    %v619 = vld [vmem:[#allocation6 + $0x3b0] sm:$0xf]
    %v620 = vld [vmem:[#allocation6 + $0x3b4] sm:$0xf]
    %v621 = vld [vmem:[#allocation6 + $0x3b8] sm:$0xf]
    %v622 = vld [vmem:[#allocation6 + $0x3bc] sm:$0xf]
    %v623 = vld [vmem:[#allocation6 + $0x3c0] sm:$0xf]
    %v624 = vld [vmem:[#allocation6 + $0x3c4] sm:$0xf]
    %v625 = vld [vmem:[#allocation6 + $0x3c8] sm:$0xf]
    %v626 = vld [vmem:[#allocation6 + $0x3cc] sm:$0xf]
    %v627 = vld [vmem:[#allocation6 + $0x3d0] sm:$0xf]
    %v628 = vld [vmem:[#allocation6 + $0x3d4] sm:$0xf]
    %v629 = vld [vmem:[#allocation6 + $0x3d8] sm:$0xf]
    %v630 = vld [vmem:[#allocation6 + $0x3dc] sm:$0xf]
    %v631 = vld [vmem:[#allocation6 + $0x3e0] sm:$0xf]
    %v632 = vld [vmem:[#allocation6 + $0x3e4] sm:$0xf]
    %v633 = vld [vmem:[#allocation6 + $0x3e8] sm:$0xf]
    %v634 = vld [vmem:[#allocation6 + $0x3ec] sm:$0xf]
    %v635 = vld [vmem:[#allocation6 + $0x3f0] sm:$0xf]
    %v636 = vld [vmem:[#allocation6 + $0x3f4] sm:$0xf]
    %v637 = vld [vmem:[#allocation6 + $0x3f8] sm:$0xf]
    %v638 = vld [vmem:[#allocation6 + $0x3fc] sm:$0xf]
    %v655 = vunpack.c.l.b16 %v383
    %v656 = vunpack.c.l.b16 %v384
    %v657 = vunpack.c.l.b16 %v385
    %v658 = vunpack.c.l.b16 %v386
    %v659 = vunpack.c.l.b16 %v387
    %v660 = vunpack.c.l.b16 %v388
    %v661 = vunpack.c.l.b16 %v389
    %v662 = vunpack.c.l.b16 %v390
    %v663 = vunpack.c.l.b16 %v391
    %v664 = vunpack.c.l.b16 %v392
    %v665 = vunpack.c.l.b16 %v393
    %v666 = vunpack.c.l.b16 %v394
    %v667 = vunpack.c.l.b16 %v395
    %v668 = vunpack.c.l.b16 %v396
    %v669 = vunpack.c.l.b16 %v397
    %v670 = vunpack.c.l.b16 %v398
    %v671 = vpack.c.b16 %v656, %v655
    %v672 = vpack.c.b16 %v658, %v657
    %v673 = vpack.c.b16 %v660, %v659
    %v674 = vpack.c.b16 %v662, %v661
    %v675 = vpack.c.b16 %v664, %v663
    %v676 = vpack.c.b16 %v666, %v665
    %v677 = vpack.c.b16 %v668, %v667
    %v678 = vpack.c.b16 %v670, %v669
    %687 = vmatprep.subr.bf16.mxu0 0
    %688 = vmatpush1.bf16.msra.mxu0 %v671
    %689 = vmatprep.subr.bf16.mxu0 0
    %690 = vmatpush1.bf16.msra.mxu0 %v672
    %691 = vmatprep.subr.bf16.mxu0 0
    %692 = vmatpush1.bf16.msra.mxu0 %v673
    %693 = vmatprep.subr.bf16.mxu0 0
    %694 = vmatpush1.bf16.msra.mxu0 %v674
    %695 = vmatprep.subr.bf16.mxu0 0
    %696 = vmatpush1.bf16.msra.mxu0 %v675
    %697 = vmatprep.subr.bf16.mxu0 0
    %698 = vmatpush1.bf16.msra.mxu0 %v676
    %699 = vmatprep.subr.bf16.mxu0 0
    %700 = vmatpush1.bf16.msra.mxu0 %v677
    %701 = vmatprep.subr.bf16.mxu0 0
    %702 = vmatpush1.bf16.msra.mxu0 %v678
    %703 = vmatprep.subr.bf16.mxu0 0
    %704 = vmatpush1.bf16.msra.mxu0 0
    %705 = vmatprep.subr.bf16.mxu0 0
    %706 = vmatpush1.bf16.msra.mxu0 0
    %707 = vmatprep.subr.bf16.mxu0 0
    %708 = vmatpush1.bf16.msra.mxu0 0
    %709 = vmatprep.subr.bf16.mxu0 0
    %710 = vmatpush1.bf16.msra.mxu0 0
    %711 = vmatprep.subr.bf16.mxu0 0
    %712 = vmatpush1.bf16.msra.mxu0 0
    %713 = vmatprep.subr.bf16.mxu0 0
    %714 = vmatpush1.bf16.msra.mxu0 0
    %715 = vmatprep.subr.bf16.mxu0 0
    %716 = vmatpush1.bf16.msra.mxu0 0
    %717 = vmatprep.subr.bf16.mxu0 0
    %718 = vmatpush1.bf16.msra.mxu0 0
    %719 = vmatprep.mubr.bf16.mxu0 0
    %720 = vmatmul.mubr.bf16.gmra.mrb[0].mxu0 %v367
    %v721 = vpop.f32.mrb[0].mxu0
    %v722 = vadd.f32 0.0, %v721
    %v723 = vpop.f32.mrb[0].mxu0
    %v724 = vpop.f32.mrb[0].mxu0
    %v725 = vpop.f32.mrb[0].mxu0
    %726 = vdwg.mxu0
    %v743 = vunpack.c.l.b16 %v399
    %v744 = vunpack.c.l.b16 %v400
    %v745 = vunpack.c.l.b16 %v401
    %v746 = vunpack.c.l.b16 %v402
    %v747 = vunpack.c.l.b16 %v403
    %v748 = vunpack.c.l.b16 %v404
    %v749 = vunpack.c.l.b16 %v405
    %v750 = vunpack.c.l.b16 %v406
    %v751 = vunpack.c.l.b16 %v407
    %v752 = vunpack.c.l.b16 %v408
    %v753 = vunpack.c.l.b16 %v409
    %v754 = vunpack.c.l.b16 %v410
    %v755 = vunpack.c.l.b16 %v411
    %v756 = vunpack.c.l.b16 %v412
    %v757 = vunpack.c.l.b16 %v413
    %v758 = vunpack.c.l.b16 %v414
    %v759 = vpack.c.b16 %v744, %v743
    %v760 = vpack.c.b16 %v746, %v745
    %v761 = vpack.c.b16 %v748, %v747
    %v762 = vpack.c.b16 %v750, %v749
    %v763 = vpack.c.b16 %v752, %v751
    %v764 = vpack.c.b16 %v754, %v753
    %v765 = vpack.c.b16 %v756, %v755
    %v766 = vpack.c.b16 %v758, %v757
    %775 = vmatprep.subr.bf16.mxu0 0
    %776 = vmatpush1.bf16.msra.mxu0 %v759
    %777 = vmatprep.subr.bf16.mxu0 0
    %778 = vmatpush1.bf16.msra.mxu0 %v760
    %779 = vmatprep.subr.bf16.mxu0 0
    %780 = vmatpush1.bf16.msra.mxu0 %v761
    %781 = vmatprep.subr.bf16.mxu0 0
    %782 = vmatpush1.bf16.msra.mxu0 %v762
    %783 = vmatprep.subr.bf16.mxu0 0
    %784 = vmatpush1.bf16.msra.mxu0 %v763
    %785 = vmatprep.subr.bf16.mxu0 0
    %786 = vmatpush1.bf16.msra.mxu0 %v764
    %787 = vmatprep.subr.bf16.mxu0 0
    %788 = vmatpush1.bf16.msra.mxu0 %v765
    %789 = vmatprep.subr.bf16.mxu0 0
    %790 = vmatpush1.bf16.msra.mxu0 %v766
    %791 = vmatprep.subr.bf16.mxu0 0
    %792 = vmatpush1.bf16.msra.mxu0 0
    %793 = vmatprep.subr.bf16.mxu0 0
    %794 = vmatpush1.bf16.msra.mxu0 0
    %795 = vmatprep.subr.bf16.mxu0 0
    %796 = vmatpush1.bf16.msra.mxu0 0
    %797 = vmatprep.subr.bf16.mxu0 0
    %798 = vmatpush1.bf16.msra.mxu0 0
    %799 = vmatprep.subr.bf16.mxu0 0
    %800 = vmatpush1.bf16.msra.mxu0 0
    %801 = vmatprep.subr.bf16.mxu0 0
    %802 = vmatpush1.bf16.msra.mxu0 0
    %803 = vmatprep.subr.bf16.mxu0 0
    %804 = vmatpush1.bf16.msra.mxu0 0
    %805 = vmatprep.subr.bf16.mxu0 0
    %806 = vmatpush1.bf16.msra.mxu0 0
    %807 = vmatprep.mubr.bf16.mxu0 0
    %808 = vmatmul.mubr.bf16.gmra.mrb[0].mxu0 %v368
    %v809 = vpop.f32.mrb[0].mxu0
    %v810 = vadd.f32 0.0, %v809
    %v811 = vpop.f32.mrb[0].mxu0
    %v812 = vpop.f32.mrb[0].mxu0
    %v813 = vpop.f32.mrb[0].mxu0
    %814 = vdwg.mxu0
    %v831 = vunpack.c.l.b16 %v415
    %v832 = vunpack.c.l.b16 %v416
    %v833 = vunpack.c.l.b16 %v417
    %v834 = vunpack.c.l.b16 %v418
    %v835 = vunpack.c.l.b16 %v419
    %v836 = vunpack.c.l.b16 %v420
    %v837 = vunpack.c.l.b16 %v421
    %v838 = vunpack.c.l.b16 %v422
    %v839 = vunpack.c.l.b16 %v423
    %v840 = vunpack.c.l.b16 %v424
    %v841 = vunpack.c.l.b16 %v425
    %v842 = vunpack.c.l.b16 %v426
    %v843 = vunpack.c.l.b16 %v427
    %v844 = vunpack.c.l.b16 %v428
    %v845 = vunpack.c.l.b16 %v429
    %v846 = vunpack.c.l.b16 %v430
    %v847 = vpack.c.b16 %v832, %v831
    %v848 = vpack.c.b16 %v834, %v833
    %v849 = vpack.c.b16 %v836, %v835
    %v850 = vpack.c.b16 %v838, %v837
    %v851 = vpack.c.b16 %v840, %v839
    %v852 = vpack.c.b16 %v842, %v841
    %v853 = vpack.c.b16 %v844, %v843
    %v854 = vpack.c.b16 %v846, %v845
    %863 = vmatprep.subr.bf16.mxu0 0
    %864 = vmatpush1.bf16.msra.mxu0 %v847
    %865 = vmatprep.subr.bf16.mxu0 0
    %866 = vmatpush1.bf16.msra.mxu0 %v848
    %867 = vmatprep.subr.bf16.mxu0 0
    %868 = vmatpush1.bf16.msra.mxu0 %v849
    %869 = vmatprep.subr.bf16.mxu0 0
    %870 = vmatpush1.bf16.msra.mxu0 %v850
    %871 = vmatprep.subr.bf16.mxu0 0
    %872 = vmatpush1.bf16.msra.mxu0 %v851
    %873 = vmatprep.subr.bf16.mxu0 0
    %874 = vmatpush1.bf16.msra.mxu0 %v852
    %875 = vmatprep.subr.bf16.mxu0 0
    %876 = vmatpush1.bf16.msra.mxu0 %v853
    %877 = vmatprep.subr.bf16.mxu0 0
    %878 = vmatpush1.bf16.msra.mxu0 %v854
    %879 = vmatprep.subr.bf16.mxu0 0
    %880 = vmatpush1.bf16.msra.mxu0 0
    %881 = vmatprep.subr.bf16.mxu0 0
    %882 = vmatpush1.bf16.msra.mxu0 0
    %883 = vmatprep.subr.bf16.mxu0 0
    %884 = vmatpush1.bf16.msra.mxu0 0
    %885 = vmatprep.subr.bf16.mxu0 0
    %886 = vmatpush1.bf16.msra.mxu0 0
    %887 = vmatprep.subr.bf16.mxu0 0
    %888 = vmatpush1.bf16.msra.mxu0 0
    %889 = vmatprep.subr.bf16.mxu0 0
    %890 = vmatpush1.bf16.msra.mxu0 0
    %891 = vmatprep.subr.bf16.mxu0 0
    %892 = vmatpush1.bf16.msra.mxu0 0
    %893 = vmatprep.subr.bf16.mxu0 0
    %894 = vmatpush1.bf16.msra.mxu0 0
    %895 = vmatprep.mubr.bf16.mxu0 0
    %896 = vmatmul.mubr.bf16.gmra.mrb[0].mxu0 %v369
    %v897 = vpop.f32.mrb[0].mxu0
    %v898 = vadd.f32 0.0, %v897
    %v899 = vpop.f32.mrb[0].mxu0
    %v900 = vpop.f32.mrb[0].mxu0
    %v901 = vpop.f32.mrb[0].mxu0
    %902 = vdwg.mxu0
    %v919 = vunpack.c.l.b16 %v431
    %v920 = vunpack.c.l.b16 %v432
    %v921 = vunpack.c.l.b16 %v433
    %v922 = vunpack.c.l.b16 %v434
    %v923 = vunpack.c.l.b16 %v435
    %v924 = vunpack.c.l.b16 %v436
    %v925 = vunpack.c.l.b16 %v437
    %v926 = vunpack.c.l.b16 %v438
    %v927 = vunpack.c.l.b16 %v439
    %v928 = vunpack.c.l.b16 %v440
    %v929 = vunpack.c.l.b16 %v441
    %v930 = vunpack.c.l.b16 %v442
    %v931 = vunpack.c.l.b16 %v443
    %v932 = vunpack.c.l.b16 %v444
    %v933 = vunpack.c.l.b16 %v445
    %v934 = vunpack.c.l.b16 %v446
    %v935 = vpack.c.b16 %v920, %v919
    %v936 = vpack.c.b16 %v922, %v921
    %v937 = vpack.c.b16 %v924, %v923
    %v938 = vpack.c.b16 %v926, %v925
    %v939 = vpack.c.b16 %v928, %v927
    %v940 = vpack.c.b16 %v930, %v929
    %v941 = vpack.c.b16 %v932, %v931
    %v942 = vpack.c.b16 %v934, %v933
    %951 = vmatprep.subr.bf16.mxu0 0
    %952 = vmatpush1.bf16.msra.mxu0 %v935
    %953 = vmatprep.subr.bf16.mxu0 0
    %954 = vmatpush1.bf16.msra.mxu0 %v936
    %955 = vmatprep.subr.bf16.mxu0 0
    %956 = vmatpush1.bf16.msra.mxu0 %v937
    %957 = vmatprep.subr.bf16.mxu0 0
    %958 = vmatpush1.bf16.msra.mxu0 %v938
    %959 = vmatprep.subr.bf16.mxu0 0
    %960 = vmatpush1.bf16.msra.mxu0 %v939
    %961 = vmatprep.subr.bf16.mxu0 0
    %962 = vmatpush1.bf16.msra.mxu0 %v940
    %963 = vmatprep.subr.bf16.mxu0 0
    %964 = vmatpush1.bf16.msra.mxu0 %v941
    %965 = vmatprep.subr.bf16.mxu0 0
    %966 = vmatpush1.bf16.msra.mxu0 %v942
    %967 = vmatprep.subr.bf16.mxu0 0
    %968 = vmatpush1.bf16.msra.mxu0 0
    %969 = vmatprep.subr.bf16.mxu0 0
    %970 = vmatpush1.bf16.msra.mxu0 0
    %971 = vmatprep.subr.bf16.mxu0 0
    %972 = vmatpush1.bf16.msra.mxu0 0
    %973 = vmatprep.subr.bf16.mxu0 0
    %974 = vmatpush1.bf16.msra.mxu0 0
    %975 = vmatprep.subr.bf16.mxu0 0
    %976 = vmatpush1.bf16.msra.mxu0 0
    %977 = vmatprep.subr.bf16.mxu0 0
    %978 = vmatpush1.bf16.msra.mxu0 0
    %979 = vmatprep.subr.bf16.mxu0 0
    %980 = vmatpush1.bf16.msra.mxu0 0
    %981 = vmatprep.subr.bf16.mxu0 0
    %982 = vmatpush1.bf16.msra.mxu0 0
    %983 = vmatprep.mubr.bf16.mxu0 0
    %984 = vmatmul.mubr.bf16.gmra.mrb[0].mxu0 %v370
    %v985 = vpop.f32.mrb[0].mxu0
    %v986 = vadd.f32 0.0, %v985
    %v987 = vpop.f32.mrb[0].mxu0
    %v988 = vpop.f32.mrb[0].mxu0
    %v989 = vpop.f32.mrb[0].mxu0
    %990 = vdwg.mxu0
    %v1007 = vunpack.c.l.b16 %v447
    %v1008 = vunpack.c.l.b16 %v448
    %v1009 = vunpack.c.l.b16 %v449
    %v1010 = vunpack.c.l.b16 %v450
    %v1011 = vunpack.c.l.b16 %v451
    %v1012 = vunpack.c.l.b16 %v452
    %v1013 = vunpack.c.l.b16 %v453
    %v1014 = vunpack.c.l.b16 %v454
    %v1015 = vunpack.c.l.b16 %v455
    %v1016 = vunpack.c.l.b16 %v456
    %v1017 = vunpack.c.l.b16 %v457
    %v1018 = vunpack.c.l.b16 %v458
    %v1019 = vunpack.c.l.b16 %v459
    %v1020 = vunpack.c.l.b16 %v460
    %v1021 = vunpack.c.l.b16 %v461
    %v1022 = vunpack.c.l.b16 %v462
    %v1023 = vpack.c.b16 %v1008, %v1007
    %v1024 = vpack.c.b16 %v1010, %v1009
    %v1025 = vpack.c.b16 %v1012, %v1011
    %v1026 = vpack.c.b16 %v1014, %v1013
    %v1027 = vpack.c.b16 %v1016, %v1015
    %v1028 = vpack.c.b16 %v1018, %v1017
    %v1029 = vpack.c.b16 %v1020, %v1019
    %v1030 = vpack.c.b16 %v1022, %v1021
    %1039 = vmatprep.subr.bf16.mxu0 0
    %1040 = vmatpush1.bf16.msra.mxu0 %v1023
    %1041 = vmatprep.subr.bf16.mxu0 0
    %1042 = vmatpush1.bf16.msra.mxu0 %v1024
    %1043 = vmatprep.subr.bf16.mxu0 0
    %1044 = vmatpush1.bf16.msra.mxu0 %v1025
    %1045 = vmatprep.subr.bf16.mxu0 0
    %1046 = vmatpush1.bf16.msra.mxu0 %v1026
    %1047 = vmatprep.subr.bf16.mxu0 0
    %1048 = vmatpush1.bf16.msra.mxu0 %v1027
    %1049 = vmatprep.subr.bf16.mxu0 0
    %1050 = vmatpush1.bf16.msra.mxu0 %v1028
    %1051 = vmatprep.subr.bf16.mxu0 0
    %1052 = vmatpush1.bf16.msra.mxu0 %v1029
    %1053 = vmatprep.subr.bf16.mxu0 0
    %1054 = vmatpush1.bf16.msra.mxu0 %v1030
    %1055 = vmatprep.subr.bf16.mxu0 0
    %1056 = vmatpush1.bf16.msra.mxu0 0
    %1057 = vmatprep.subr.bf16.mxu0 0
    %1058 = vmatpush1.bf16.msra.mxu0 0
    %1059 = vmatprep.subr.bf16.mxu0 0
    %1060 = vmatpush1.bf16.msra.mxu0 0
    %1061 = vmatprep.subr.bf16.mxu0 0
    %1062 = vmatpush1.bf16.msra.mxu0 0
    %1063 = vmatprep.subr.bf16.mxu0 0
    %1064 = vmatpush1.bf16.msra.mxu0 0
    %1065 = vmatprep.subr.bf16.mxu0 0
    %1066 = vmatpush1.bf16.msra.mxu0 0
    %1067 = vmatprep.subr.bf16.mxu0 0
    %1068 = vmatpush1.bf16.msra.mxu0 0
    %1069 = vmatprep.subr.bf16.mxu0 0
    %1070 = vmatpush1.bf16.msra.mxu0 0
    %1071 = vmatprep.mubr.bf16.mxu0 0
    %1072 = vmatmul.mubr.bf16.gmra.mrb[0].mxu0 %v371
    %v1073 = vpop.f32.mrb[0].mxu0
    %v1074 = vadd.f32 0.0, %v1073
    %v1075 = vpop.f32.mrb[0].mxu0
    %v1076 = vpop.f32.mrb[0].mxu0
    %v1077 = vpop.f32.mrb[0].mxu0
    %1078 = vdwg.mxu0
    %v1095 = vunpack.c.l.b16 %v463
    %v1096 = vunpack.c.l.b16 %v464
    %v1097 = vunpack.c.l.b16 %v465
    %v1098 = vunpack.c.l.b16 %v466
    %v1099 = vunpack.c.l.b16 %v467
    %v1100 = vunpack.c.l.b16 %v468
    %v1101 = vunpack.c.l.b16 %v469
    %v1102 = vunpack.c.l.b16 %v470
    %v1103 = vunpack.c.l.b16 %v471
    %v1104 = vunpack.c.l.b16 %v472
    %v1105 = vunpack.c.l.b16 %v473
    %v1106 = vunpack.c.l.b16 %v474
    %v1107 = vunpack.c.l.b16 %v475
    %v1108 = vunpack.c.l.b16 %v476
    %v1109 = vunpack.c.l.b16 %v477
    %v1110 = vunpack.c.l.b16 %v478
    %v1111 = vpack.c.b16 %v1096, %v1095
    %v1112 = vpack.c.b16 %v1098, %v1097
    %v1113 = vpack.c.b16 %v1100, %v1099
    %v1114 = vpack.c.b16 %v1102, %v1101
    %v1115 = vpack.c.b16 %v1104, %v1103
    %v1116 = vpack.c.b16 %v1106, %v1105
    %v1117 = vpack.c.b16 %v1108, %v1107
    %v1118 = vpack.c.b16 %v1110, %v1109
    %1127 = vmatprep.subr.bf16.mxu0 0
    %1128 = vmatpush1.bf16.msra.mxu0 %v1111
    %1129 = vmatprep.subr.bf16.mxu0 0
    %1130 = vmatpush1.bf16.msra.mxu0 %v1112
    %1131 = vmatprep.subr.bf16.mxu0 0
    %1132 = vmatpush1.bf16.msra.mxu0 %v1113
    %1133 = vmatprep.subr.bf16.mxu0 0
    %1134 = vmatpush1.bf16.msra.mxu0 %v1114
    %1135 = vmatprep.subr.bf16.mxu0 0
    %1136 = vmatpush1.bf16.msra.mxu0 %v1115
    %1137 = vmatprep.subr.bf16.mxu0 0
    %1138 = vmatpush1.bf16.msra.mxu0 %v1116
    %1139 = vmatprep.subr.bf16.mxu0 0
    %1140 = vmatpush1.bf16.msra.mxu0 %v1117
    %1141 = vmatprep.subr.bf16.mxu0 0
    %1142 = vmatpush1.bf16.msra.mxu0 %v1118
    %1143 = vmatprep.subr.bf16.mxu0 0
    %1144 = vmatpush1.bf16.msra.mxu0 0
    %1145 = vmatprep.subr.bf16.mxu0 0
    %1146 = vmatpush1.bf16.msra.mxu0 0
    %1147 = vmatprep.subr.bf16.mxu0 0
    %1148 = vmatpush1.bf16.msra.mxu0 0
    %1149 = vmatprep.subr.bf16.mxu0 0
    %1150 = vmatpush1.bf16.msra.mxu0 0
    %1151 = vmatprep.subr.bf16.mxu0 0
    %1152 = vmatpush1.bf16.msra.mxu0 0
    %1153 = vmatprep.subr.bf16.mxu0 0
    %1154 = vmatpush1.bf16.msra.mxu0 0
    %1155 = vmatprep.subr.bf16.mxu0 0
    %1156 = vmatpush1.bf16.msra.mxu0 0
    %1157 = vmatprep.subr.bf16.mxu0 0
    %1158 = vmatpush1.bf16.msra.mxu0 0
    %1159 = vmatprep.mubr.bf16.mxu0 0
    %1160 = vmatmul.mubr.bf16.gmra.mrb[0].mxu0 %v372
    %v1161 = vpop.f32.mrb[0].mxu0
    %v1162 = vadd.f32 0.0, %v1161
    %v1163 = vpop.f32.mrb[0].mxu0
    %v1164 = vpop.f32.mrb[0].mxu0
    %v1165 = vpop.f32.mrb[0].mxu0
    %1166 = vdwg.mxu0
    %v1183 = vunpack.c.l.b16 %v479
    %v1184 = vunpack.c.l.b16 %v480
    %v1185 = vunpack.c.l.b16 %v481
    %v1186 = vunpack.c.l.b16 %v482
    %v1187 = vunpack.c.l.b16 %v483
    %v1188 = vunpack.c.l.b16 %v484
    %v1189 = vunpack.c.l.b16 %v485
    %v1190 = vunpack.c.l.b16 %v486
    %v1191 = vunpack.c.l.b16 %v487
    %v1192 = vunpack.c.l.b16 %v488
    %v1193 = vunpack.c.l.b16 %v489
    %v1194 = vunpack.c.l.b16 %v490
    %v1195 = vunpack.c.l.b16 %v491
    %v1196 = vunpack.c.l.b16 %v492
    %v1197 = vunpack.c.l.b16 %v493
    %v1198 = vunpack.c.l.b16 %v494
    %v1199 = vpack.c.b16 %v1184, %v1183
    %v1200 = vpack.c.b16 %v1186, %v1185
    %v1201 = vpack.c.b16 %v1188, %v1187
    %v1202 = vpack.c.b16 %v1190, %v1189
    %v1203 = vpack.c.b16 %v1192, %v1191
    %v1204 = vpack.c.b16 %v1194, %v1193
    %v1205 = vpack.c.b16 %v1196, %v1195
    %v1206 = vpack.c.b16 %v1198, %v1197
    %1215 = vmatprep.subr.bf16.mxu0 0
    %1216 = vmatpush1.bf16.msra.mxu0 %v1199
    %1217 = vmatprep.subr.bf16.mxu0 0
    %1218 = vmatpush1.bf16.msra.mxu0 %v1200
    %1219 = vmatprep.subr.bf16.mxu0 0
    %1220 = vmatpush1.bf16.msra.mxu0 %v1201
    %1221 = vmatprep.subr.bf16.mxu0 0
    %1222 = vmatpush1.bf16.msra.mxu0 %v1202
    %1223 = vmatprep.subr.bf16.mxu0 0
    %1224 = vmatpush1.bf16.msra.mxu0 %v1203
    %1225 = vmatprep.subr.bf16.mxu0 0
    %1226 = vmatpush1.bf16.msra.mxu0 %v1204
    %1227 = vmatprep.subr.bf16.mxu0 0
    %1228 = vmatpush1.bf16.msra.mxu0 %v1205
    %1229 = vmatprep.subr.bf16.mxu0 0
    %1230 = vmatpush1.bf16.msra.mxu0 %v1206
    %1231 = vmatprep.subr.bf16.mxu0 0
    %1232 = vmatpush1.bf16.msra.mxu0 0
    %1233 = vmatprep.subr.bf16.mxu0 0
    %1234 = vmatpush1.bf16.msra.mxu0 0
    %1235 = vmatprep.subr.bf16.mxu0 0
    %1236 = vmatpush1.bf16.msra.mxu0 0
    %1237 = vmatprep.subr.bf16.mxu0 0
    %1238 = vmatpush1.bf16.msra.mxu0 0
    %1239 = vmatprep.subr.bf16.mxu0 0
    %1240 = vmatpush1.bf16.msra.mxu0 0
    %1241 = vmatprep.subr.bf16.mxu0 0
    %1242 = vmatpush1.bf16.msra.mxu0 0
    %1243 = vmatprep.subr.bf16.mxu0 0
    %1244 = vmatpush1.bf16.msra.mxu0 0
    %1245 = vmatprep.subr.bf16.mxu0 0
    %1246 = vmatpush1.bf16.msra.mxu0 0
    %1247 = vmatprep.mubr.bf16.mxu0 0
    %1248 = vmatmul.mubr.bf16.gmra.mrb[0].mxu0 %v373
    %v1249 = vpop.f32.mrb[0].mxu0
    %v1250 = vadd.f32 0.0, %v1249
    %v1251 = vpop.f32.mrb[0].mxu0
    %v1252 = vpop.f32.mrb[0].mxu0
    %v1253 = vpop.f32.mrb[0].mxu0
    %1254 = vdwg.mxu0
    %v1271 = vunpack.c.l.b16 %v495
    %v1272 = vunpack.c.l.b16 %v496
    %v1273 = vunpack.c.l.b16 %v497
    %v1274 = vunpack.c.l.b16 %v498
    %v1275 = vunpack.c.l.b16 %v499
    %v1276 = vunpack.c.l.b16 %v500
    %v1277 = vunpack.c.l.b16 %v501
    %v1278 = vunpack.c.l.b16 %v502
    %v1279 = vunpack.c.l.b16 %v503
    %v1280 = vunpack.c.l.b16 %v504
    %v1281 = vunpack.c.l.b16 %v505
    %v1282 = vunpack.c.l.b16 %v506
    %v1283 = vunpack.c.l.b16 %v507
    %v1284 = vunpack.c.l.b16 %v508
    %v1285 = vunpack.c.l.b16 %v509
    %v1286 = vunpack.c.l.b16 %v510
    %v1287 = vpack.c.b16 %v1272, %v1271
    %v1288 = vpack.c.b16 %v1274, %v1273
    %v1289 = vpack.c.b16 %v1276, %v1275
    %v1290 = vpack.c.b16 %v1278, %v1277
    %v1291 = vpack.c.b16 %v1280, %v1279
    %v1292 = vpack.c.b16 %v1282, %v1281
    %v1293 = vpack.c.b16 %v1284, %v1283
    %v1294 = vpack.c.b16 %v1286, %v1285
    %1303 = vmatprep.subr.bf16.mxu0 0
    %1304 = vmatpush1.bf16.msra.mxu0 %v1287
    %1305 = vmatprep.subr.bf16.mxu0 0
    %1306 = vmatpush1.bf16.msra.mxu0 %v1288
    %1307 = vmatprep.subr.bf16.mxu0 0
    %1308 = vmatpush1.bf16.msra.mxu0 %v1289
    %1309 = vmatprep.subr.bf16.mxu0 0
    %1310 = vmatpush1.bf16.msra.mxu0 %v1290
    %1311 = vmatprep.subr.bf16.mxu0 0
    %1312 = vmatpush1.bf16.msra.mxu0 %v1291
    %1313 = vmatprep.subr.bf16.mxu0 0
    %1314 = vmatpush1.bf16.msra.mxu0 %v1292
    %1315 = vmatprep.subr.bf16.mxu0 0
    %1316 = vmatpush1.bf16.msra.mxu0 %v1293
    %1317 = vmatprep.subr.bf16.mxu0 0
    %1318 = vmatpush1.bf16.msra.mxu0 %v1294
    %1319 = vmatprep.subr.bf16.mxu0 0
    %1320 = vmatpush1.bf16.msra.mxu0 0
    %1321 = vmatprep.subr.bf16.mxu0 0
    %1322 = vmatpush1.bf16.msra.mxu0 0
    %1323 = vmatprep.subr.bf16.mxu0 0
    %1324 = vmatpush1.bf16.msra.mxu0 0
    %1325 = vmatprep.subr.bf16.mxu0 0
    %1326 = vmatpush1.bf16.msra.mxu0 0
    %1327 = vmatprep.subr.bf16.mxu0 0
    %1328 = vmatpush1.bf16.msra.mxu0 0
    %1329 = vmatprep.subr.bf16.mxu0 0
    %1330 = vmatpush1.bf16.msra.mxu0 0
    %1331 = vmatprep.subr.bf16.mxu0 0
    %1332 = vmatpush1.bf16.msra.mxu0 0
    %1333 = vmatprep.subr.bf16.mxu0 0
    %1334 = vmatpush1.bf16.msra.mxu0 0
    %1335 = vmatprep.mubr.bf16.mxu0 0
    %1336 = vmatmul.mubr.bf16.gmra.mrb[0].mxu0 %v374
    %v1337 = vpop.f32.mrb[0].mxu0
    %v1338 = vadd.f32 0.0, %v1337
    %v1339 = vpop.f32.mrb[0].mxu0
    %v1340 = vpop.f32.mrb[0].mxu0
    %v1341 = vpop.f32.mrb[0].mxu0
    %1342 = vdwg.mxu0
    %v1359 = vunpack.c.l.b16 %v511
    %v1360 = vunpack.c.l.b16 %v512
    %v1361 = vunpack.c.l.b16 %v513
    %v1362 = vunpack.c.l.b16 %v514
    %v1363 = vunpack.c.l.b16 %v515
    %v1364 = vunpack.c.l.b16 %v516
    %v1365 = vunpack.c.l.b16 %v517
    %v1366 = vunpack.c.l.b16 %v518
    %v1367 = vunpack.c.l.b16 %v519
    %v1368 = vunpack.c.l.b16 %v520
    %v1369 = vunpack.c.l.b16 %v521
    %v1370 = vunpack.c.l.b16 %v522
    %v1371 = vunpack.c.l.b16 %v523
    %v1372 = vunpack.c.l.b16 %v524
    %v1373 = vunpack.c.l.b16 %v525
    %v1374 = vunpack.c.l.b16 %v526
    %v1375 = vpack.c.b16 %v1360, %v1359
    %v1376 = vpack.c.b16 %v1362, %v1361
    %v1377 = vpack.c.b16 %v1364, %v1363
    %v1378 = vpack.c.b16 %v1366, %v1365
    %v1379 = vpack.c.b16 %v1368, %v1367
    %v1380 = vpack.c.b16 %v1370, %v1369
    %v1381 = vpack.c.b16 %v1372, %v1371
    %v1382 = vpack.c.b16 %v1374, %v1373
    %1391 = vmatprep.subr.bf16.mxu0 0
    %1392 = vmatpush1.bf16.msra.mxu0 %v1375
    %1393 = vmatprep.subr.bf16.mxu0 0
    %1394 = vmatpush1.bf16.msra.mxu0 %v1376
    %1395 = vmatprep.subr.bf16.mxu0 0
    %1396 = vmatpush1.bf16.msra.mxu0 %v1377
    %1397 = vmatprep.subr.bf16.mxu0 0
    %1398 = vmatpush1.bf16.msra.mxu0 %v1378
    %1399 = vmatprep.subr.bf16.mxu0 0
    %1400 = vmatpush1.bf16.msra.mxu0 %v1379
    %1401 = vmatprep.subr.bf16.mxu0 0
    %1402 = vmatpush1.bf16.msra.mxu0 %v1380
    %1403 = vmatprep.subr.bf16.mxu0 0
    %1404 = vmatpush1.bf16.msra.mxu0 %v1381
    %1405 = vmatprep.subr.bf16.mxu0 0
    %1406 = vmatpush1.bf16.msra.mxu0 %v1382
    %1407 = vmatprep.subr.bf16.mxu0 0
    %1408 = vmatpush1.bf16.msra.mxu0 0
    %1409 = vmatprep.subr.bf16.mxu0 0
    %1410 = vmatpush1.bf16.msra.mxu0 0
    %1411 = vmatprep.subr.bf16.mxu0 0
    %1412 = vmatpush1.bf16.msra.mxu0 0
    %1413 = vmatprep.subr.bf16.mxu0 0
    %1414 = vmatpush1.bf16.msra.mxu0 0
    %1415 = vmatprep.subr.bf16.mxu0 0
    %1416 = vmatpush1.bf16.msra.mxu0 0
    %1417 = vmatprep.subr.bf16.mxu0 0
    %1418 = vmatpush1.bf16.msra.mxu0 0
    %1419 = vmatprep.subr.bf16.mxu0 0
    %1420 = vmatpush1.bf16.msra.mxu0 0
    %1421 = vmatprep.subr.bf16.mxu0 0
    %1422 = vmatpush1.bf16.msra.mxu0 0
    %1423 = vmatprep.mubr.bf16.mxu0 0
    %1424 = vmatmul.mubr.bf16.gmra.mrb[0].mxu0 %v375
    %v1425 = vpop.f32.mrb[0].mxu0
    %v1426 = vadd.f32 0.0, %v1425
    %v1427 = vpop.f32.mrb[0].mxu0
    %v1428 = vpop.f32.mrb[0].mxu0
    %v1429 = vpop.f32.mrb[0].mxu0
    %1430 = vdwg.mxu0
    %v1447 = vunpack.c.l.b16 %v527
    %v1448 = vunpack.c.l.b16 %v528
    %v1449 = vunpack.c.l.b16 %v529
    %v1450 = vunpack.c.l.b16 %v530
    %v1451 = vunpack.c.l.b16 %v531
    %v1452 = vunpack.c.l.b16 %v532
    %v1453 = vunpack.c.l.b16 %v533
    %v1454 = vunpack.c.l.b16 %v534
    %v1455 = vunpack.c.l.b16 %v535
    %v1456 = vunpack.c.l.b16 %v536
    %v1457 = vunpack.c.l.b16 %v537
    %v1458 = vunpack.c.l.b16 %v538
    %v1459 = vunpack.c.l.b16 %v539
    %v1460 = vunpack.c.l.b16 %v540
    %v1461 = vunpack.c.l.b16 %v541
    %v1462 = vunpack.c.l.b16 %v542
    %v1463 = vpack.c.b16 %v1448, %v1447
    %v1464 = vpack.c.b16 %v1450, %v1449
    %v1465 = vpack.c.b16 %v1452, %v1451
    %v1466 = vpack.c.b16 %v1454, %v1453
    %v1467 = vpack.c.b16 %v1456, %v1455
    %v1468 = vpack.c.b16 %v1458, %v1457
    %v1469 = vpack.c.b16 %v1460, %v1459
    %v1470 = vpack.c.b16 %v1462, %v1461
    %1479 = vmatprep.subr.bf16.mxu0 0
    %1480 = vmatpush1.bf16.msra.mxu0 %v1463
    %1481 = vmatprep.subr.bf16.mxu0 0
    %1482 = vmatpush1.bf16.msra.mxu0 %v1464
    %1483 = vmatprep.subr.bf16.mxu0 0
    %1484 = vmatpush1.bf16.msra.mxu0 %v1465
    %1485 = vmatprep.subr.bf16.mxu0 0
    %1486 = vmatpush1.bf16.msra.mxu0 %v1466
    %1487 = vmatprep.subr.bf16.mxu0 0
    %1488 = vmatpush1.bf16.msra.mxu0 %v1467
    %1489 = vmatprep.subr.bf16.mxu0 0
    %1490 = vmatpush1.bf16.msra.mxu0 %v1468
    %1491 = vmatprep.subr.bf16.mxu0 0
    %1492 = vmatpush1.bf16.msra.mxu0 %v1469
    %1493 = vmatprep.subr.bf16.mxu0 0
    %1494 = vmatpush1.bf16.msra.mxu0 %v1470
    %1495 = vmatprep.subr.bf16.mxu0 0
    %1496 = vmatpush1.bf16.msra.mxu0 0
    %1497 = vmatprep.subr.bf16.mxu0 0
    %1498 = vmatpush1.bf16.msra.mxu0 0
    %1499 = vmatprep.subr.bf16.mxu0 0
    %1500 = vmatpush1.bf16.msra.mxu0 0
    %1501 = vmatprep.subr.bf16.mxu0 0
    %1502 = vmatpush1.bf16.msra.mxu0 0
    %1503 = vmatprep.subr.bf16.mxu0 0
    %1504 = vmatpush1.bf16.msra.mxu0 0
    %1505 = vmatprep.subr.bf16.mxu0 0
    %1506 = vmatpush1.bf16.msra.mxu0 0
    %1507 = vmatprep.subr.bf16.mxu0 0
    %1508 = vmatpush1.bf16.msra.mxu0 0
    %1509 = vmatprep.subr.bf16.mxu0 0
    %1510 = vmatpush1.bf16.msra.mxu0 0
    %1511 = vmatprep.mubr.bf16.mxu0 0
    %1512 = vmatmul.mubr.bf16.gmra.mrb[0].mxu0 %v376
    %v1513 = vpop.f32.mrb[0].mxu0
    %v1514 = vadd.f32 0.0, %v1513
    %v1515 = vpop.f32.mrb[0].mxu0
    %v1516 = vpop.f32.mrb[0].mxu0
    %v1517 = vpop.f32.mrb[0].mxu0
    %1518 = vdwg.mxu0
    %v1535 = vunpack.c.l.b16 %v543
    %v1536 = vunpack.c.l.b16 %v544
    %v1537 = vunpack.c.l.b16 %v545
    %v1538 = vunpack.c.l.b16 %v546
    %v1539 = vunpack.c.l.b16 %v547
    %v1540 = vunpack.c.l.b16 %v548
    %v1541 = vunpack.c.l.b16 %v549
    %v1542 = vunpack.c.l.b16 %v550
    %v1543 = vunpack.c.l.b16 %v551
    %v1544 = vunpack.c.l.b16 %v552
    %v1545 = vunpack.c.l.b16 %v553
    %v1546 = vunpack.c.l.b16 %v554
    %v1547 = vunpack.c.l.b16 %v555
    %v1548 = vunpack.c.l.b16 %v556
    %v1549 = vunpack.c.l.b16 %v557
    %v1550 = vunpack.c.l.b16 %v558
    %v1551 = vpack.c.b16 %v1536, %v1535
    %v1552 = vpack.c.b16 %v1538, %v1537
    %v1553 = vpack.c.b16 %v1540, %v1539
    %v1554 = vpack.c.b16 %v1542, %v1541
    %v1555 = vpack.c.b16 %v1544, %v1543
    %v1556 = vpack.c.b16 %v1546, %v1545
    %v1557 = vpack.c.b16 %v1548, %v1547
    %v1558 = vpack.c.b16 %v1550, %v1549
    %1567 = vmatprep.subr.bf16.mxu0 0
    %1568 = vmatpush1.bf16.msra.mxu0 %v1551
    %1569 = vmatprep.subr.bf16.mxu0 0
    %1570 = vmatpush1.bf16.msra.mxu0 %v1552
    %1571 = vmatprep.subr.bf16.mxu0 0
    %1572 = vmatpush1.bf16.msra.mxu0 %v1553
    %1573 = vmatprep.subr.bf16.mxu0 0
    %1574 = vmatpush1.bf16.msra.mxu0 %v1554
    %1575 = vmatprep.subr.bf16.mxu0 0
    %1576 = vmatpush1.bf16.msra.mxu0 %v1555
    %1577 = vmatprep.subr.bf16.mxu0 0
    %1578 = vmatpush1.bf16.msra.mxu0 %v1556
    %1579 = vmatprep.subr.bf16.mxu0 0
    %1580 = vmatpush1.bf16.msra.mxu0 %v1557
    %1581 = vmatprep.subr.bf16.mxu0 0
    %1582 = vmatpush1.bf16.msra.mxu0 %v1558
    %1583 = vmatprep.subr.bf16.mxu0 0
    %1584 = vmatpush1.bf16.msra.mxu0 0
    %1585 = vmatprep.subr.bf16.mxu0 0
    %1586 = vmatpush1.bf16.msra.mxu0 0
    %1587 = vmatprep.subr.bf16.mxu0 0
    %1588 = vmatpush1.bf16.msra.mxu0 0
    %1589 = vmatprep.subr.bf16.mxu0 0
    %1590 = vmatpush1.bf16.msra.mxu0 0
    %1591 = vmatprep.subr.bf16.mxu0 0
    %1592 = vmatpush1.bf16.msra.mxu0 0
    %1593 = vmatprep.subr.bf16.mxu0 0
    %1594 = vmatpush1.bf16.msra.mxu0 0
    %1595 = vmatprep.subr.bf16.mxu0 0
    %1596 = vmatpush1.bf16.msra.mxu0 0
    %1597 = vmatprep.subr.bf16.mxu0 0
    %1598 = vmatpush1.bf16.msra.mxu0 0
    %1599 = vmatprep.mubr.bf16.mxu0 0
    %1600 = vmatmul.mubr.bf16.gmra.mrb[0].mxu0 %v377
    %v1601 = vpop.f32.mrb[0].mxu0
    %v1602 = vadd.f32 0.0, %v1601
    %v1603 = vpop.f32.mrb[0].mxu0
    %v1604 = vpop.f32.mrb[0].mxu0
    %v1605 = vpop.f32.mrb[0].mxu0
    %1606 = vdwg.mxu0
    %v1623 = vunpack.c.l.b16 %v559
    %v1624 = vunpack.c.l.b16 %v560
    %v1625 = vunpack.c.l.b16 %v561
    %v1626 = vunpack.c.l.b16 %v562
    %v1627 = vunpack.c.l.b16 %v563
    %v1628 = vunpack.c.l.b16 %v564
    %v1629 = vunpack.c.l.b16 %v565
    %v1630 = vunpack.c.l.b16 %v566
    %v1631 = vunpack.c.l.b16 %v567
    %v1632 = vunpack.c.l.b16 %v568
    %v1633 = vunpack.c.l.b16 %v569
    %v1634 = vunpack.c.l.b16 %v570
    %v1635 = vunpack.c.l.b16 %v571
    %v1636 = vunpack.c.l.b16 %v572
    %v1637 = vunpack.c.l.b16 %v573
    %v1638 = vunpack.c.l.b16 %v574
    %v1639 = vpack.c.b16 %v1624, %v1623
    %v1640 = vpack.c.b16 %v1626, %v1625
    %v1641 = vpack.c.b16 %v1628, %v1627
    %v1642 = vpack.c.b16 %v1630, %v1629
    %v1643 = vpack.c.b16 %v1632, %v1631
    %v1644 = vpack.c.b16 %v1634, %v1633
    %v1645 = vpack.c.b16 %v1636, %v1635
    %v1646 = vpack.c.b16 %v1638, %v1637
    %1655 = vmatprep.subr.bf16.mxu0 0
    %1656 = vmatpush1.bf16.msra.mxu0 %v1639
    %1657 = vmatprep.subr.bf16.mxu0 0
    %1658 = vmatpush1.bf16.msra.mxu0 %v1640
    %1659 = vmatprep.subr.bf16.mxu0 0
    %1660 = vmatpush1.bf16.msra.mxu0 %v1641
    %1661 = vmatprep.subr.bf16.mxu0 0
    %1662 = vmatpush1.bf16.msra.mxu0 %v1642
    %1663 = vmatprep.subr.bf16.mxu0 0
    %1664 = vmatpush1.bf16.msra.mxu0 %v1643
    %1665 = vmatprep.subr.bf16.mxu0 0
    %1666 = vmatpush1.bf16.msra.mxu0 %v1644
    %1667 = vmatprep.subr.bf16.mxu0 0
    %1668 = vmatpush1.bf16.msra.mxu0 %v1645
    %1669 = vmatprep.subr.bf16.mxu0 0
    %1670 = vmatpush1.bf16.msra.mxu0 %v1646
    %1671 = vmatprep.subr.bf16.mxu0 0
    %1672 = vmatpush1.bf16.msra.mxu0 0
    %1673 = vmatprep.subr.bf16.mxu0 0
    %1674 = vmatpush1.bf16.msra.mxu0 0
    %1675 = vmatprep.subr.bf16.mxu0 0
    %1676 = vmatpush1.bf16.msra.mxu0 0
    %1677 = vmatprep.subr.bf16.mxu0 0
    %1678 = vmatpush1.bf16.msra.mxu0 0
    %1679 = vmatprep.subr.bf16.mxu0 0
    %1680 = vmatpush1.bf16.msra.mxu0 0
    %1681 = vmatprep.subr.bf16.mxu0 0
    %1682 = vmatpush1.bf16.msra.mxu0 0
    %1683 = vmatprep.subr.bf16.mxu0 0
    %1684 = vmatpush1.bf16.msra.mxu0 0
    %1685 = vmatprep.subr.bf16.mxu0 0
    %1686 = vmatpush1.bf16.msra.mxu0 0
    %1687 = vmatprep.mubr.bf16.mxu0 0
    %1688 = vmatmul.mubr.bf16.gmra.mrb[0].mxu0 %v378
    %v1689 = vpop.f32.mrb[0].mxu0
    %v1690 = vadd.f32 0.0, %v1689
    %v1691 = vpop.f32.mrb[0].mxu0
    %v1692 = vpop.f32.mrb[0].mxu0
    %v1693 = vpop.f32.mrb[0].mxu0
    %1694 = vdwg.mxu0
    %v1711 = vunpack.c.l.b16 %v575
    %v1712 = vunpack.c.l.b16 %v576
    %v1713 = vunpack.c.l.b16 %v577
    %v1714 = vunpack.c.l.b16 %v578
    %v1715 = vunpack.c.l.b16 %v579
    %v1716 = vunpack.c.l.b16 %v580
    %v1717 = vunpack.c.l.b16 %v581
    %v1718 = vunpack.c.l.b16 %v582
    %v1719 = vunpack.c.l.b16 %v583
    %v1720 = vunpack.c.l.b16 %v584
    %v1721 = vunpack.c.l.b16 %v585
    %v1722 = vunpack.c.l.b16 %v586
    %v1723 = vunpack.c.l.b16 %v587
    %v1724 = vunpack.c.l.b16 %v588
    %v1725 = vunpack.c.l.b16 %v589
    %v1726 = vunpack.c.l.b16 %v590
    %v1727 = vpack.c.b16 %v1712, %v1711
    %v1728 = vpack.c.b16 %v1714, %v1713
    %v1729 = vpack.c.b16 %v1716, %v1715
    %v1730 = vpack.c.b16 %v1718, %v1717
    %v1731 = vpack.c.b16 %v1720, %v1719
    %v1732 = vpack.c.b16 %v1722, %v1721
    %v1733 = vpack.c.b16 %v1724, %v1723
    %v1734 = vpack.c.b16 %v1726, %v1725
    %1743 = vmatprep.subr.bf16.mxu0 0
    %1744 = vmatpush1.bf16.msra.mxu0 %v1727
    %1745 = vmatprep.subr.bf16.mxu0 0
    %1746 = vmatpush1.bf16.msra.mxu0 %v1728
    %1747 = vmatprep.subr.bf16.mxu0 0
    %1748 = vmatpush1.bf16.msra.mxu0 %v1729
    %1749 = vmatprep.subr.bf16.mxu0 0
    %1750 = vmatpush1.bf16.msra.mxu0 %v1730
    %1751 = vmatprep.subr.bf16.mxu0 0
    %1752 = vmatpush1.bf16.msra.mxu0 %v1731
    %1753 = vmatprep.subr.bf16.mxu0 0
    %1754 = vmatpush1.bf16.msra.mxu0 %v1732
    %1755 = vmatprep.subr.bf16.mxu0 0
    %1756 = vmatpush1.bf16.msra.mxu0 %v1733
    %1757 = vmatprep.subr.bf16.mxu0 0
    %1758 = vmatpush1.bf16.msra.mxu0 %v1734
    %1759 = vmatprep.subr.bf16.mxu0 0
    %1760 = vmatpush1.bf16.msra.mxu0 0
    %1761 = vmatprep.subr.bf16.mxu0 0
    %1762 = vmatpush1.bf16.msra.mxu0 0
    %1763 = vmatprep.subr.bf16.mxu0 0
    %1764 = vmatpush1.bf16.msra.mxu0 0
    %1765 = vmatprep.subr.bf16.mxu0 0
    %1766 = vmatpush1.bf16.msra.mxu0 0
    %1767 = vmatprep.subr.bf16.mxu0 0
    %1768 = vmatpush1.bf16.msra.mxu0 0
    %1769 = vmatprep.subr.bf16.mxu0 0
    %1770 = vmatpush1.bf16.msra.mxu0 0
    %1771 = vmatprep.subr.bf16.mxu0 0
    %1772 = vmatpush1.bf16.msra.mxu0 0
    %1773 = vmatprep.subr.bf16.mxu0 0
    %1774 = vmatpush1.bf16.msra.mxu0 0
    %1775 = vmatprep.mubr.bf16.mxu0 0
    %1776 = vmatmul.mubr.bf16.gmra.mrb[0].mxu0 %v379
    %v1777 = vpop.f32.mrb[0].mxu0
    %v1778 = vadd.f32 0.0, %v1777
    %v1779 = vpop.f32.mrb[0].mxu0
    %v1780 = vpop.f32.mrb[0].mxu0
    %v1781 = vpop.f32.mrb[0].mxu0
    %1782 = vdwg.mxu0
    %v1799 = vunpack.c.l.b16 %v591
    %v1800 = vunpack.c.l.b16 %v592
    %v1801 = vunpack.c.l.b16 %v593
    %v1802 = vunpack.c.l.b16 %v594
    %v1803 = vunpack.c.l.b16 %v595
    %v1804 = vunpack.c.l.b16 %v596
    %v1805 = vunpack.c.l.b16 %v597
    %v1806 = vunpack.c.l.b16 %v598
    %v1807 = vunpack.c.l.b16 %v599
    %v1808 = vunpack.c.l.b16 %v600
    %v1809 = vunpack.c.l.b16 %v601
    %v1810 = vunpack.c.l.b16 %v602
    %v1811 = vunpack.c.l.b16 %v603
    %v1812 = vunpack.c.l.b16 %v604
    %v1813 = vunpack.c.l.b16 %v605
    %v1814 = vunpack.c.l.b16 %v606
    %v1815 = vpack.c.b16 %v1800, %v1799
    %v1816 = vpack.c.b16 %v1802, %v1801
    %v1817 = vpack.c.b16 %v1804, %v1803
    %v1818 = vpack.c.b16 %v1806, %v1805
    %v1819 = vpack.c.b16 %v1808, %v1807
    %v1820 = vpack.c.b16 %v1810, %v1809
    %v1821 = vpack.c.b16 %v1812, %v1811
    %v1822 = vpack.c.b16 %v1814, %v1813
    %1831 = vmatprep.subr.bf16.mxu0 0
    %1832 = vmatpush1.bf16.msra.mxu0 %v1815
    %1833 = vmatprep.subr.bf16.mxu0 0
    %1834 = vmatpush1.bf16.msra.mxu0 %v1816
    %1835 = vmatprep.subr.bf16.mxu0 0
    %1836 = vmatpush1.bf16.msra.mxu0 %v1817
    %1837 = vmatprep.subr.bf16.mxu0 0
    %1838 = vmatpush1.bf16.msra.mxu0 %v1818
    %1839 = vmatprep.subr.bf16.mxu0 0
    %1840 = vmatpush1.bf16.msra.mxu0 %v1819
    %1841 = vmatprep.subr.bf16.mxu0 0
    %1842 = vmatpush1.bf16.msra.mxu0 %v1820
    %1843 = vmatprep.subr.bf16.mxu0 0
    %1844 = vmatpush1.bf16.msra.mxu0 %v1821
    %1845 = vmatprep.subr.bf16.mxu0 0
    %1846 = vmatpush1.bf16.msra.mxu0 %v1822
    %1847 = vmatprep.subr.bf16.mxu0 0
    %1848 = vmatpush1.bf16.msra.mxu0 0
    %1849 = vmatprep.subr.bf16.mxu0 0
    %1850 = vmatpush1.bf16.msra.mxu0 0
    %1851 = vmatprep.subr.bf16.mxu0 0
    %1852 = vmatpush1.bf16.msra.mxu0 0
    %1853 = vmatprep.subr.bf16.mxu0 0
    %1854 = vmatpush1.bf16.msra.mxu0 0
    %1855 = vmatprep.subr.bf16.mxu0 0
    %1856 = vmatpush1.bf16.msra.mxu0 0
    %1857 = vmatprep.subr.bf16.mxu0 0
    %1858 = vmatpush1.bf16.msra.mxu0 0
    %1859 = vmatprep.subr.bf16.mxu0 0
    %1860 = vmatpush1.bf16.msra.mxu0 0
    %1861 = vmatprep.subr.bf16.mxu0 0
    %1862 = vmatpush1.bf16.msra.mxu0 0
    %1863 = vmatprep.mubr.bf16.mxu0 0
    %1864 = vmatmul.mubr.bf16.gmra.mrb[0].mxu0 %v380
    %v1865 = vpop.f32.mrb[0].mxu0
    %v1866 = vadd.f32 0.0, %v1865
    %v1867 = vpop.f32.mrb[0].mxu0
    %v1868 = vpop.f32.mrb[0].mxu0
    %v1869 = vpop.f32.mrb[0].mxu0
    %1870 = vdwg.mxu0
    %v1887 = vunpack.c.l.b16 %v607
    %v1888 = vunpack.c.l.b16 %v608
    %v1889 = vunpack.c.l.b16 %v609
    %v1890 = vunpack.c.l.b16 %v610
    %v1891 = vunpack.c.l.b16 %v611
    %v1892 = vunpack.c.l.b16 %v612
    %v1893 = vunpack.c.l.b16 %v613
    %v1894 = vunpack.c.l.b16 %v614
    %v1895 = vunpack.c.l.b16 %v615
    %v1896 = vunpack.c.l.b16 %v616
    %v1897 = vunpack.c.l.b16 %v617
    %v1898 = vunpack.c.l.b16 %v618
    %v1899 = vunpack.c.l.b16 %v619
    %v1900 = vunpack.c.l.b16 %v620
    %v1901 = vunpack.c.l.b16 %v621
    %v1902 = vunpack.c.l.b16 %v622
    %v1903 = vpack.c.b16 %v1888, %v1887
    %v1904 = vpack.c.b16 %v1890, %v1889
    %v1905 = vpack.c.b16 %v1892, %v1891
    %v1906 = vpack.c.b16 %v1894, %v1893
    %v1907 = vpack.c.b16 %v1896, %v1895
    %v1908 = vpack.c.b16 %v1898, %v1897
    %v1909 = vpack.c.b16 %v1900, %v1899
    %v1910 = vpack.c.b16 %v1902, %v1901
    %1919 = vmatprep.subr.bf16.mxu0 0
    %1920 = vmatpush1.bf16.msra.mxu0 %v1903
    %1921 = vmatprep.subr.bf16.mxu0 0
    %1922 = vmatpush1.bf16.msra.mxu0 %v1904
    %1923 = vmatprep.subr.bf16.mxu0 0
    %1924 = vmatpush1.bf16.msra.mxu0 %v1905
    %1925 = vmatprep.subr.bf16.mxu0 0
    %1926 = vmatpush1.bf16.msra.mxu0 %v1906
    %1927 = vmatprep.subr.bf16.mxu0 0
    %1928 = vmatpush1.bf16.msra.mxu0 %v1907
    %1929 = vmatprep.subr.bf16.mxu0 0
    %1930 = vmatpush1.bf16.msra.mxu0 %v1908
    %1931 = vmatprep.subr.bf16.mxu0 0
    %1932 = vmatpush1.bf16.msra.mxu0 %v1909
    %1933 = vmatprep.subr.bf16.mxu0 0
    %1934 = vmatpush1.bf16.msra.mxu0 %v1910
    %1935 = vmatprep.subr.bf16.mxu0 0
    %1936 = vmatpush1.bf16.msra.mxu0 0
    %1937 = vmatprep.subr.bf16.mxu0 0
    %1938 = vmatpush1.bf16.msra.mxu0 0
    %1939 = vmatprep.subr.bf16.mxu0 0
    %1940 = vmatpush1.bf16.msra.mxu0 0
    %1941 = vmatprep.subr.bf16.mxu0 0
    %1942 = vmatpush1.bf16.msra.mxu0 0
    %1943 = vmatprep.subr.bf16.mxu0 0
    %1944 = vmatpush1.bf16.msra.mxu0 0
    %1945 = vmatprep.subr.bf16.mxu0 0
    %1946 = vmatpush1.bf16.msra.mxu0 0
    %1947 = vmatprep.subr.bf16.mxu0 0
    %1948 = vmatpush1.bf16.msra.mxu0 0
    %1949 = vmatprep.subr.bf16.mxu0 0
    %1950 = vmatpush1.bf16.msra.mxu0 0
    %1951 = vmatprep.mubr.bf16.mxu0 0
    %1952 = vmatmul.mubr.bf16.gmra.mrb[0].mxu0 %v381
    %v1953 = vpop.f32.mrb[0].mxu0
    %v1954 = vadd.f32 0.0, %v1953
    %v1955 = vpop.f32.mrb[0].mxu0
    %v1956 = vpop.f32.mrb[0].mxu0
    %v1957 = vpop.f32.mrb[0].mxu0
    %1958 = vdwg.mxu0
    %v1975 = vunpack.c.l.b16 %v623
    %v1976 = vunpack.c.l.b16 %v624
    %v1977 = vunpack.c.l.b16 %v625
    %v1978 = vunpack.c.l.b16 %v626
    %v1979 = vunpack.c.l.b16 %v627
    %v1980 = vunpack.c.l.b16 %v628
    %v1981 = vunpack.c.l.b16 %v629
    %v1982 = vunpack.c.l.b16 %v630
    %v1983 = vunpack.c.l.b16 %v631
    %v1984 = vunpack.c.l.b16 %v632
    %v1985 = vunpack.c.l.b16 %v633
    %v1986 = vunpack.c.l.b16 %v634
    %v1987 = vunpack.c.l.b16 %v635
    %v1988 = vunpack.c.l.b16 %v636
    %v1989 = vunpack.c.l.b16 %v637
    %v1990 = vunpack.c.l.b16 %v638
    %v1991 = vpack.c.b16 %v1976, %v1975
    %v1992 = vpack.c.b16 %v1978, %v1977
    %v1993 = vpack.c.b16 %v1980, %v1979
    %v1994 = vpack.c.b16 %v1982, %v1981
    %v1995 = vpack.c.b16 %v1984, %v1983
    %v1996 = vpack.c.b16 %v1986, %v1985
    %v1997 = vpack.c.b16 %v1988, %v1987
    %v1998 = vpack.c.b16 %v1990, %v1989
    %2007 = vmatprep.subr.bf16.mxu0 0
    %2008 = vmatpush1.bf16.msra.mxu0 %v1991
    %2009 = vmatprep.subr.bf16.mxu0 0
    %2010 = vmatpush1.bf16.msra.mxu0 %v1992
    %2011 = vmatprep.subr.bf16.mxu0 0
    %2012 = vmatpush1.bf16.msra.mxu0 %v1993
    %2013 = vmatprep.subr.bf16.mxu0 0
    %2014 = vmatpush1.bf16.msra.mxu0 %v1994
    %2015 = vmatprep.subr.bf16.mxu0 0
    %2016 = vmatpush1.bf16.msra.mxu0 %v1995
    %2017 = vmatprep.subr.bf16.mxu0 0
    %2018 = vmatpush1.bf16.msra.mxu0 %v1996
    %2019 = vmatprep.subr.bf16.mxu0 0
    %2020 = vmatpush1.bf16.msra.mxu0 %v1997
    %2021 = vmatprep.subr.bf16.mxu0 0
    %2022 = vmatpush1.bf16.msra.mxu0 %v1998
    %2023 = vmatprep.subr.bf16.mxu0 0
    %2024 = vmatpush1.bf16.msra.mxu0 0
    %2025 = vmatprep.subr.bf16.mxu0 0
    %2026 = vmatpush1.bf16.msra.mxu0 0
    %2027 = vmatprep.subr.bf16.mxu0 0
    %2028 = vmatpush1.bf16.msra.mxu0 0
    %2029 = vmatprep.subr.bf16.mxu0 0
    %2030 = vmatpush1.bf16.msra.mxu0 0
    %2031 = vmatprep.subr.bf16.mxu0 0
    %2032 = vmatpush1.bf16.msra.mxu0 0
    %2033 = vmatprep.subr.bf16.mxu0 0
    %2034 = vmatpush1.bf16.msra.mxu0 0
    %2035 = vmatprep.subr.bf16.mxu0 0
    %2036 = vmatpush1.bf16.msra.mxu0 0
    %2037 = vmatprep.subr.bf16.mxu0 0
    %2038 = vmatpush1.bf16.msra.mxu0 0
    %2039 = vmatprep.mubr.bf16.mxu0 0
    %2040 = vmatmul.mubr.bf16.gmra.mrb[0].mxu0 %v382
    %v2041 = vpop.f32.mrb[0].mxu0
    %v2042 = vadd.f32 0.0, %v2041
    %v2043 = vpop.f32.mrb[0].mxu0
    %v2044 = vpop.f32.mrb[0].mxu0
    %v2045 = vpop.f32.mrb[0].mxu0
    %2046 = vdwg.mxu0
    %v2047 = vadd.f32 %v351, %v722
    %v2048 = vadd.f32 %v352, %v810
    %v2049 = vadd.f32 %v353, %v898
    %v2050 = vadd.f32 %v354, %v986
    %v2051 = vadd.f32 %v355, %v1074
    %v2052 = vadd.f32 %v356, %v1162
    %v2053 = vadd.f32 %v357, %v1250
    %v2054 = vadd.f32 %v358, %v1338
    %v2055 = vadd.f32 %v359, %v1426
    %v2056 = vadd.f32 %v360, %v1514
    %v2057 = vadd.f32 %v361, %v1602
    %v2058 = vadd.f32 %v362, %v1690
    %v2059 = vadd.f32 %v363, %v1778
    %v2060 = vadd.f32 %v364, %v1866
    %v2061 = vadd.f32 %v365, %v1954
    %v2062 = vadd.f32 %v366, %v2042
    %2063 = vst [vmem:[#allocation2] sm:$0xf] %v2047
    %2064 = vst [vmem:[#allocation2 + $0x4] sm:$0xf] %v2048
    %2065 = vst [vmem:[#allocation2 + $0x8] sm:$0xf] %v2049
    %2066 = vst [vmem:[#allocation2 + $0xc] sm:$0xf] %v2050
    %2067 = vst [vmem:[#allocation2 + $0x10] sm:$0xf] %v2051
    %2068 = vst [vmem:[#allocation2 + $0x14] sm:$0xf] %v2052
    %2069 = vst [vmem:[#allocation2 + $0x18] sm:$0xf] %v2053
    %2070 = vst [vmem:[#allocation2 + $0x1c] sm:$0xf] %v2054
    %2071 = vst [vmem:[#allocation2 + $0x20] sm:$0xf] %v2055
    %2072 = vst [vmem:[#allocation2 + $0x24] sm:$0xf] %v2056
    %2073 = vst [vmem:[#allocation2 + $0x28] sm:$0xf] %v2057
    %2074 = vst [vmem:[#allocation2 + $0x2c] sm:$0xf] %v2058
    %2075 = vst [vmem:[#allocation2 + $0x30] sm:$0xf] %v2059
    %2076 = vst [vmem:[#allocation2 + $0x34] sm:$0xf] %v2060
    %2077 = vst [vmem:[#allocation2 + $0x38] sm:$0xf] %v2061
    %2078 = vst [vmem:[#allocation2 + $0x3c] sm:$0xf] %v2062
    // Predicated region
    $region38: #{be_layer_forward.1} parent=1 // pred_check
      %p2079 = pneg %p63
    $region39: #{be_layer_forward.1} parent=1 // pred_check_branch
      %2081 = sbr.rel (%p2079) target = $region41
    $region40: #{be_layer_forward.1} parent=1 // pred_region
      %v2082 = vld [vmem:[#allocation2] sm:$0xf]
      %v2083 = vld [vmem:[#allocation2 + $0x4] sm:$0xf]
      %v2084 = vld [vmem:[#allocation2 + $0x8] sm:$0xf]
      %v2085 = vld [vmem:[#allocation2 + $0xc] sm:$0xf]
      %v2086 = vld [vmem:[#allocation2 + $0x10] sm:$0xf]
      %v2087 = vld [vmem:[#allocation2 + $0x14] sm:$0xf]
      %v2088 = vld [vmem:[#allocation2 + $0x18] sm:$0xf]
      %v2089 = vld [vmem:[#allocation2 + $0x1c] sm:$0xf]
      %v2090 = vld [vmem:[#allocation2 + $0x20] sm:$0xf]
      %v2091 = vld [vmem:[#allocation2 + $0x24] sm:$0xf]
      %v2092 = vld [vmem:[#allocation2 + $0x28] sm:$0xf]
      %v2093 = vld [vmem:[#allocation2 + $0x2c] sm:$0xf]
      %v2094 = vld [vmem:[#allocation2 + $0x30] sm:$0xf]
      %v2095 = vld [vmem:[#allocation2 + $0x34] sm:$0xf]
      %v2096 = vld [vmem:[#allocation2 + $0x38] sm:$0xf]
      %v2097 = vld [vmem:[#allocation2 + $0x3c] sm:$0xf]
      %v2098 = vld [vmem:[#allocation8] sm:$0xf]
      %v2099 = vld [vmem:[#allocation8 + $0x4] sm:$0xf]
      %v2100 = vld [vmem:[#allocation8 + $0x8] sm:$0xf]
      %v2101 = vld [vmem:[#allocation8 + $0xc] sm:$0xf]
      %v2102 = vld [vmem:[#allocation8 + $0x10] sm:$0xf]
      %v2103 = vld [vmem:[#allocation8 + $0x14] sm:$0xf]
      %v2104 = vld [vmem:[#allocation8 + $0x18] sm:$0xf]
      %v2105 = vld [vmem:[#allocation8 + $0x1c] sm:$0xf]
      %v2106 = vld [vmem:[#allocation8 + $0x20] sm:$0xf]
      %v2107 = vld [vmem:[#allocation8 + $0x24] sm:$0xf]
      %v2108 = vld [vmem:[#allocation8 + $0x28] sm:$0xf]
      %v2109 = vld [vmem:[#allocation8 + $0x2c] sm:$0xf]
      %v2110 = vld [vmem:[#allocation8 + $0x30] sm:$0xf]
      %v2111 = vld [vmem:[#allocation8 + $0x34] sm:$0xf]
      %v2112 = vld [vmem:[#allocation8 + $0x38] sm:$0xf]
      %v2113 = vld [vmem:[#allocation8 + $0x3c] sm:$0xf]
      %v2114 = vadd.f32 %v2082, %v2098
      %v2115 = vadd.f32 %v2083, %v2099
      %v2116 = vadd.f32 %v2084, %v2100
      %v2117 = vadd.f32 %v2085, %v2101
      %v2118 = vadd.f32 %v2086, %v2102
      %v2119 = vadd.f32 %v2087, %v2103
      %v2120 = vadd.f32 %v2088, %v2104
      %v2121 = vadd.f32 %v2089, %v2105
      %v2122 = vadd.f32 %v2090, %v2106
      %v2123 = vadd.f32 %v2091, %v2107
      %v2124 = vadd.f32 %v2092, %v2108
      %v2125 = vadd.f32 %v2093, %v2109
      %v2126 = vadd.f32 %v2094, %v2110
      %v2127 = vadd.f32 %v2095, %v2111
      %v2128 = vadd.f32 %v2096, %v2112
      %v2129 = vadd.f32 %v2097, %v2113
      %v2130 = vld [vmem:[%s4] sm:$0x1]
      %v2131 = vld [vmem:[%s4 + $0x1] sm:$0x1]
      %v2132 = vsel %vm99, %v2114, 0.0
      %2133 = vadd.xlane.f32.xlu0 %v2132
      %v2134 = vpop.xlane.xlu0 %2133
      %v2135 = vsel %vm99, %v2115, 0.0
      %2136 = vadd.xlane.f32.xlu0 %v2135
      %v2137 = vpop.xlane.xlu0 %2136
      %v2138 = vsel %vm99, %v2116, 0.0
      %2139 = vadd.xlane.f32.xlu0 %v2138
      %v2140 = vpop.xlane.xlu0 %2139
      %v2141 = vsel %vm99, %v2117, 0.0
      %2142 = vadd.xlane.f32.xlu0 %v2141
      %v2143 = vpop.xlane.xlu0 %2142
      %v2144 = vsel %vm99, %v2118, 0.0
      %2145 = vadd.xlane.f32.xlu0 %v2144
      %v2146 = vpop.xlane.xlu0 %2145
      %v2147 = vsel %vm99, %v2119, 0.0
      %2148 = vadd.xlane.f32.xlu0 %v2147
      %v2149 = vpop.xlane.xlu0 %2148
      %v2150 = vsel %vm99, %v2120, 0.0
      %2151 = vadd.xlane.f32.xlu0 %v2150
      %v2152 = vpop.xlane.xlu0 %2151
      %v2153 = vsel %vm99, %v2121, 0.0
      %2154 = vadd.xlane.f32.xlu0 %v2153
      %v2155 = vpop.xlane.xlu0 %2154
      %v2156 = vsel %vm99, %v2122, 0.0
      %2157 = vadd.xlane.f32.xlu0 %v2156
      %v2158 = vpop.xlane.xlu0 %2157
      %v2159 = vsel %vm99, %v2123, 0.0
      %2160 = vadd.xlane.f32.xlu0 %v2159
      %v2161 = vpop.xlane.xlu0 %2160
      %v2162 = vsel %vm99, %v2124, 0.0
      %2163 = vadd.xlane.f32.xlu0 %v2162
      %v2164 = vpop.xlane.xlu0 %2163
      %v2165 = vsel %vm99, %v2125, 0.0
      %2166 = vadd.xlane.f32.xlu0 %v2165
      %v2167 = vpop.xlane.xlu0 %2166
      %v2168 = vsel %vm99, %v2126, 0.0
      %2169 = vadd.xlane.f32.xlu0 %v2168
      %v2170 = vpop.xlane.xlu0 %2169
      %v2171 = vsel %vm99, %v2127, 0.0
      %2172 = vadd.xlane.f32.xlu0 %v2171
      %v2173 = vpop.xlane.xlu0 %2172
      %v2174 = vsel %vm99, %v2128, 0.0
      %2175 = vadd.xlane.f32.xlu0 %v2174
      %v2176 = vpop.xlane.xlu0 %2175
      %v2177 = vsel %vm99, %v2129, 0.0
      %2178 = vadd.xlane.f32.xlu0 %v2177
      %v2179 = vpop.xlane.xlu0 %2178
      %v2180 = vmul.f32 %v2134, %v148
      %v2181 = vmul.f32 %v2137, %v148
      %v2182 = vmul.f32 %v2140, %v148
      %v2183 = vmul.f32 %v2143, %v148
      %v2184 = vmul.f32 %v2146, %v148
      %v2185 = vmul.f32 %v2149, %v148
      %v2186 = vmul.f32 %v2152, %v148
      %v2187 = vmul.f32 %v2155, %v148
      %v2188 = vmul.f32 %v2158, %v148
      %v2189 = vmul.f32 %v2161, %v148
      %v2190 = vmul.f32 %v2164, %v148
      %v2191 = vmul.f32 %v2167, %v148
      %v2192 = vmul.f32 %v2170, %v148
      %v2193 = vmul.f32 %v2173, %v148
      %v2194 = vmul.f32 %v2176, %v148
      %v2195 = vmul.f32 %v2179, %v148
      %v2196 = vsub.f32 %v2114, %v2180
      %v2197 = vsub.f32 %v2115, %v2181
      %v2198 = vsub.f32 %v2116, %v2182
      %v2199 = vsub.f32 %v2117, %v2183
      %v2200 = vsub.f32 %v2118, %v2184
      %v2201 = vsub.f32 %v2119, %v2185
      %v2202 = vsub.f32 %v2120, %v2186
      %v2203 = vsub.f32 %v2121, %v2187
      %v2204 = vsub.f32 %v2122, %v2188
      %v2205 = vsub.f32 %v2123, %v2189
      %v2206 = vsub.f32 %v2124, %v2190
      %v2207 = vsub.f32 %v2125, %v2191
      %v2208 = vsub.f32 %v2126, %v2192
      %v2209 = vsub.f32 %v2127, %v2193
      %v2210 = vsub.f32 %v2128, %v2194
      %v2211 = vsub.f32 %v2129, %v2195
      %v2212 = vmul.f32 %v2196, %v2196
      %v2213 = vmul.f32 %v2197, %v2197
      %v2214 = vmul.f32 %v2198, %v2198
      %v2215 = vmul.f32 %v2199, %v2199
      %v2216 = vmul.f32 %v2200, %v2200
      %v2217 = vmul.f32 %v2201, %v2201
      %v2218 = vmul.f32 %v2202, %v2202
      %v2219 = vmul.f32 %v2203, %v2203
      %v2220 = vmul.f32 %v2204, %v2204
      %v2221 = vmul.f32 %v2205, %v2205
      %v2222 = vmul.f32 %v2206, %v2206
      %v2223 = vmul.f32 %v2207, %v2207
      %v2224 = vmul.f32 %v2208, %v2208
      %v2225 = vmul.f32 %v2209, %v2209
      %v2226 = vmul.f32 %v2210, %v2210
      %v2227 = vmul.f32 %v2211, %v2211
      %v2228 = vsel %vm99, %v2212, 0.0
      %2229 = vadd.xlane.f32.xlu0 %v2228
      %v2230 = vpop.xlane.xlu0 %2229
      %v2231 = vsel %vm99, %v2213, 0.0
      %2232 = vadd.xlane.f32.xlu0 %v2231
      %v2233 = vpop.xlane.xlu0 %2232
      %v2234 = vsel %vm99, %v2214, 0.0
      %2235 = vadd.xlane.f32.xlu0 %v2234
      %v2236 = vpop.xlane.xlu0 %2235
      %v2237 = vsel %vm99, %v2215, 0.0
      %2238 = vadd.xlane.f32.xlu0 %v2237
      %v2239 = vpop.xlane.xlu0 %2238
      %v2240 = vsel %vm99, %v2216, 0.0
      %2241 = vadd.xlane.f32.xlu0 %v2240
      %v2242 = vpop.xlane.xlu0 %2241
      %v2243 = vsel %vm99, %v2217, 0.0
      %2244 = vadd.xlane.f32.xlu0 %v2243
      %v2245 = vpop.xlane.xlu0 %2244
      %v2246 = vsel %vm99, %v2218, 0.0
      %2247 = vadd.xlane.f32.xlu0 %v2246
      %v2248 = vpop.xlane.xlu0 %2247
      %v2249 = vsel %vm99, %v2219, 0.0
      %2250 = vadd.xlane.f32.xlu0 %v2249
      %v2251 = vpop.xlane.xlu0 %2250
      %v2252 = vsel %vm99, %v2220, 0.0
      %2253 = vadd.xlane.f32.xlu0 %v2252
      %v2254 = vpop.xlane.xlu0 %2253
      %v2255 = vsel %vm99, %v2221, 0.0
      %2256 = vadd.xlane.f32.xlu0 %v2255
      %v2257 = vpop.xlane.xlu0 %2256
      %v2258 = vsel %vm99, %v2222, 0.0
      %2259 = vadd.xlane.f32.xlu0 %v2258
      %v2260 = vpop.xlane.xlu0 %2259
      %v2261 = vsel %vm99, %v2223, 0.0
      %2262 = vadd.xlane.f32.xlu0 %v2261
      %v2263 = vpop.xlane.xlu0 %2262
      %v2264 = vsel %vm99, %v2224, 0.0
      %2265 = vadd.xlane.f32.xlu0 %v2264
      %v2266 = vpop.xlane.xlu0 %2265
      %v2267 = vsel %vm99, %v2225, 0.0
      %2268 = vadd.xlane.f32.xlu0 %v2267
      %v2269 = vpop.xlane.xlu0 %2268
      %v2270 = vsel %vm99, %v2226, 0.0
      %2271 = vadd.xlane.f32.xlu0 %v2270
      %v2272 = vpop.xlane.xlu0 %2271
      %v2273 = vsel %vm99, %v2227, 0.0
      %2274 = vadd.xlane.f32.xlu0 %v2273
      %v2275 = vpop.xlane.xlu0 %2274
      %v2276 = vmul.f32 %v2230, %v148
      %v2277 = vmul.f32 %v2233, %v148
      %v2278 = vmul.f32 %v2236, %v148
      %v2279 = vmul.f32 %v2239, %v148
      %v2280 = vmul.f32 %v2242, %v148
      %v2281 = vmul.f32 %v2245, %v148
      %v2282 = vmul.f32 %v2248, %v148
      %v2283 = vmul.f32 %v2251, %v148
      %v2284 = vmul.f32 %v2254, %v148
      %v2285 = vmul.f32 %v2257, %v148
      %v2286 = vmul.f32 %v2260, %v148
      %v2287 = vmul.f32 %v2263, %v148
      %v2288 = vmul.f32 %v2266, %v148
      %v2289 = vmul.f32 %v2269, %v148
      %v2290 = vmul.f32 %v2272, %v148
      %v2291 = vmul.f32 %v2275, %v148
      %v2292 = vadd.f32 %v2276, 1e-05
      %v2293 = vadd.f32 %v2277, 1e-05
      %v2294 = vadd.f32 %v2278, 1e-05
      %v2295 = vadd.f32 %v2279, 1e-05
      %v2296 = vadd.f32 %v2280, 1e-05
      %v2297 = vadd.f32 %v2281, 1e-05
      %v2298 = vadd.f32 %v2282, 1e-05
      %v2299 = vadd.f32 %v2283, 1e-05
      %v2300 = vadd.f32 %v2284, 1e-05
      %v2301 = vadd.f32 %v2285, 1e-05
      %v2302 = vadd.f32 %v2286, 1e-05
      %v2303 = vadd.f32 %v2287, 1e-05
      %v2304 = vadd.f32 %v2288, 1e-05
      %v2305 = vadd.f32 %v2289, 1e-05
      %v2306 = vadd.f32 %v2290, 1e-05
      %v2307 = vadd.f32 %v2291, 1e-05
      %v2308 = vrsqrt.pop %v2292
      %v2309 = vrsqrt.pop %v2293
      %v2310 = vrsqrt.pop %v2294
      %v2311 = vrsqrt.pop %v2295
      %v2312 = vrsqrt.pop %v2296
      %v2313 = vrsqrt.pop %v2297
      %v2314 = vrsqrt.pop %v2298
      %v2315 = vrsqrt.pop %v2299
      %v2316 = vrsqrt.pop %v2300
      %v2317 = vrsqrt.pop %v2301
      %v2318 = vrsqrt.pop %v2302
      %v2319 = vrsqrt.pop %v2303
      %v2320 = vrsqrt.pop %v2304
      %v2321 = vrsqrt.pop %v2305
      %v2322 = vrsqrt.pop %v2306
      %v2323 = vrsqrt.pop %v2307
      %v2324 = vmul.f32 %v2196, %v2308
      %v2325 = vmul.f32 %v2197, %v2309
      %v2326 = vmul.f32 %v2198, %v2310
      %v2327 = vmul.f32 %v2199, %v2311
      %v2328 = vmul.f32 %v2200, %v2312
      %v2329 = vmul.f32 %v2201, %v2313
      %v2330 = vmul.f32 %v2202, %v2314
      %v2331 = vmul.f32 %v2203, %v2315
      %v2332 = vmul.f32 %v2204, %v2316
      %v2333 = vmul.f32 %v2205, %v2317
      %v2334 = vmul.f32 %v2206, %v2318
      %v2335 = vmul.f32 %v2207, %v2319
      %v2336 = vmul.f32 %v2208, %v2320
      %v2337 = vmul.f32 %v2209, %v2321
      %v2338 = vmul.f32 %v2210, %v2322
      %v2339 = vmul.f32 %v2211, %v2323
      %v2340 = vlaneseq
      %v2341 = vshrl.u32 %v2340, 7
      %v2342 = vsub.s32 0, %v2341
      %v2343 = vrot.slane %v2130, %v2342
      %v2344 = vmul.f32 %v2324, %v2343
      %v2345 = vmul.f32 %v2325, %v2343
      %v2346 = vmul.f32 %v2326, %v2343
      %v2347 = vmul.f32 %v2327, %v2343
      %v2348 = vmul.f32 %v2328, %v2343
      %v2349 = vmul.f32 %v2329, %v2343
      %v2350 = vmul.f32 %v2330, %v2343
      %v2351 = vmul.f32 %v2331, %v2343
      %v2352 = vmul.f32 %v2332, %v2343
      %v2353 = vmul.f32 %v2333, %v2343
      %v2354 = vmul.f32 %v2334, %v2343
      %v2355 = vmul.f32 %v2335, %v2343
      %v2356 = vmul.f32 %v2336, %v2343
      %v2357 = vmul.f32 %v2337, %v2343
      %v2358 = vmul.f32 %v2338, %v2343
      %v2359 = vmul.f32 %v2339, %v2343
      %v2360 = vlaneseq
      %v2361 = vshrl.u32 %v2360, 7
      %v2362 = vsub.s32 0, %v2361
      %v2363 = vrot.slane %v2131, %v2362
      %v2364 = vadd.f32 %v2344, %v2363
      %v2365 = vadd.f32 %v2345, %v2363
      %v2366 = vadd.f32 %v2346, %v2363
      %v2367 = vadd.f32 %v2347, %v2363
      %v2368 = vadd.f32 %v2348, %v2363
      %v2369 = vadd.f32 %v2349, %v2363
      %v2370 = vadd.f32 %v2350, %v2363
      %v2371 = vadd.f32 %v2351, %v2363
      %v2372 = vadd.f32 %v2352, %v2363
      %v2373 = vadd.f32 %v2353, %v2363
      %v2374 = vadd.f32 %v2354, %v2363
      %v2375 = vadd.f32 %v2355, %v2363
      %v2376 = vadd.f32 %v2356, %v2363
      %v2377 = vadd.f32 %v2357, %v2363
      %v2378 = vadd.f32 %v2358, %v2363
      %v2379 = vadd.f32 %v2359, %v2363
      %v2380 = vmul.f32 %v2364, 0.5
      %v2381 = vmul.f32 %v2365, 0.5
      %v2382 = vmul.f32 %v2366, 0.5
      %v2383 = vmul.f32 %v2367, 0.5
      %v2384 = vmul.f32 %v2368, 0.5
      %v2385 = vmul.f32 %v2369, 0.5
      %v2386 = vmul.f32 %v2370, 0.5
      %v2387 = vmul.f32 %v2371, 0.5
      %v2388 = vmul.f32 %v2372, 0.5
      %v2389 = vmul.f32 %v2373, 0.5
      %v2390 = vmul.f32 %v2374, 0.5
      %v2391 = vmul.f32 %v2375, 0.5
      %v2392 = vmul.f32 %v2376, 0.5
      %v2393 = vmul.f32 %v2377, 0.5
      %v2394 = vmul.f32 %v2378, 0.5
      %v2395 = vmul.f32 %v2379, 0.5
      %v2396 = vmul.f32 %v2364, 0.70710677
      %v2397 = vmul.f32 %v2365, 0.70710677
      %v2398 = vmul.f32 %v2366, 0.70710677
      %v2399 = vmul.f32 %v2367, 0.70710677
      %v2400 = vmul.f32 %v2368, 0.70710677
      %v2401 = vmul.f32 %v2369, 0.70710677
      %v2402 = vmul.f32 %v2370, 0.70710677
      %v2403 = vmul.f32 %v2371, 0.70710677
      %v2404 = vmul.f32 %v2372, 0.70710677
      %v2405 = vmul.f32 %v2373, 0.70710677
      %v2406 = vmul.f32 %v2374, 0.70710677
      %v2407 = vmul.f32 %v2375, 0.70710677
      %v2408 = vmul.f32 %v2376, 0.70710677
      %v2409 = vmul.f32 %v2377, 0.70710677
      %v2410 = vmul.f32 %v2378, 0.70710677
      %v2411 = vmul.f32 %v2379, 0.70710677
      %v2412 = verf.f32.pop %v2396
      %v2413 = verf.f32.pop %v2397
      %v2414 = verf.f32.pop %v2398
      %v2415 = verf.f32.pop %v2399
      %v2416 = verf.f32.pop %v2400
      %v2417 = verf.f32.pop %v2401
      %v2418 = verf.f32.pop %v2402
      %v2419 = verf.f32.pop %v2403
      %v2420 = verf.f32.pop %v2404
      %v2421 = verf.f32.pop %v2405
      %v2422 = verf.f32.pop %v2406
      %v2423 = verf.f32.pop %v2407
      %v2424 = verf.f32.pop %v2408
      %v2425 = verf.f32.pop %v2409
      %v2426 = verf.f32.pop %v2410
      %v2427 = verf.f32.pop %v2411
      %v2428 = vadd.f32 %v2412, 1.0
      %v2429 = vadd.f32 %v2413, 1.0
      %v2430 = vadd.f32 %v2414, 1.0
      %v2431 = vadd.f32 %v2415, 1.0
      %v2432 = vadd.f32 %v2416, 1.0
      %v2433 = vadd.f32 %v2417, 1.0
      %v2434 = vadd.f32 %v2418, 1.0
      %v2435 = vadd.f32 %v2419, 1.0
      %v2436 = vadd.f32 %v2420, 1.0
      %v2437 = vadd.f32 %v2421, 1.0
      %v2438 = vadd.f32 %v2422, 1.0
      %v2439 = vadd.f32 %v2423, 1.0
      %v2440 = vadd.f32 %v2424, 1.0
      %v2441 = vadd.f32 %v2425, 1.0
      %v2442 = vadd.f32 %v2426, 1.0
      %v2443 = vadd.f32 %v2427, 1.0
      %v2444 = vmul.f32 %v2380, %v2428
      %v2445 = vmul.f32 %v2381, %v2429
      %v2446 = vmul.f32 %v2382, %v2430
      %v2447 = vmul.f32 %v2383, %v2431
      %v2448 = vmul.f32 %v2384, %v2432
      %v2449 = vmul.f32 %v2385, %v2433
      %v2450 = vmul.f32 %v2386, %v2434
      %v2451 = vmul.f32 %v2387, %v2435
      %v2452 = vmul.f32 %v2388, %v2436
      %v2453 = vmul.f32 %v2389, %v2437
      %v2454 = vmul.f32 %v2390, %v2438
      %v2455 = vmul.f32 %v2391, %v2439
      %v2456 = vmul.f32 %v2392, %v2440
      %v2457 = vmul.f32 %v2393, %v2441
      %v2458 = vmul.f32 %v2394, %v2442
      %v2459 = vmul.f32 %v2395, %v2443
      %2460 = vst [vmem:[#allocation9] sm:$0xf] %v2444
      %2461 = vst [vmem:[#allocation9 + $0x4] sm:$0xf] %v2445
      %2462 = vst [vmem:[#allocation9 + $0x8] sm:$0xf] %v2446
      %2463 = vst [vmem:[#allocation9 + $0xc] sm:$0xf] %v2447
      %2464 = vst [vmem:[#allocation9 + $0x10] sm:$0xf] %v2448
      %2465 = vst [vmem:[#allocation9 + $0x14] sm:$0xf] %v2449
      %2466 = vst [vmem:[#allocation9 + $0x18] sm:$0xf] %v2450
      %2467 = vst [vmem:[#allocation9 + $0x1c] sm:$0xf] %v2451
      %2468 = vst [vmem:[#allocation9 + $0x20] sm:$0xf] %v2452
      %2469 = vst [vmem:[#allocation9 + $0x24] sm:$0xf] %v2453
      %2470 = vst [vmem:[#allocation9 + $0x28] sm:$0xf] %v2454
      %2471 = vst [vmem:[#allocation9 + $0x2c] sm:$0xf] %v2455
      %2472 = vst [vmem:[#allocation9 + $0x30] sm:$0xf] %v2456
      %2473 = vst [vmem:[#allocation9 + $0x34] sm:$0xf] %v2457
      %2474 = vst [vmem:[#allocation9 + $0x38] sm:$0xf] %v2458
      %2475 = vst [vmem:[#allocation9 + $0x3c] sm:$0xf] %v2459
    $region41: #{be_layer_forward.1} parent=1 // pred_fallthru
      _
    // Predicated region
    $region42: #{be_layer_forward.1} parent=1 // pred_check
      _
    $region43: #{be_layer_forward.1} parent=1 // pred_check_branch
      %2477 = sbr.rel (0) target = $region45
    $region44: #{be_layer_forward.1} parent=1 // pred_region
      %s2479 = ssub.s32 1024, 1024
      %2480 = vsyncadd [#allocation5], %s2479
      %s2481 = sshll.u32 [#allocation9], 4
      %s2482 = int_to_ptr.vmem [resolvable:$true] %s2481
      %2487 = dma.vmem_to_hbm [thread:$0]  %s2482, 1024, %s5, [#allocation5], 64, 64, 4
    $region45: #{be_layer_forward.1} parent=1 // pred_fallthru
      _
    // Predicated region
    $region46: #{be_layer_forward.1} parent=1 // pred_check
      _
    $region47: #{be_layer_forward.1} parent=1 // pred_check_branch
      %2489 = sbr.rel (0) target = $region49
    $region48: #{be_layer_forward.1} parent=1 // pred_region
      %2490 = dma.done [#allocation5], 1024
    $region49: #{be_layer_forward.1} parent=1 // pred_fallthru
      _
    %2491 = vsyncpa [#allocation4], 1
    %2492 = vsyncpa [#allocation7], 1
    %2493 = vsyncpa [#allocation5], 1

</llo_original>
